<compile_context>
chip_gen: v7x
topology: tpu7x:2x2x1
jax: 0.10.0
libtpu: 0.0.40
codegen_flags: <defaults>
</compile_context>

<pallas_src>
import functools

import jax
import jax.numpy as jnp
import numpy as np
from jax.experimental import pallas as pl
from jax.experimental.pallas import tpu as pltpu

EPS = 1e-5


# ---------------------------------------------------------------------------
# In-kernel helpers (traced inside the Pallas kernel body)
# ---------------------------------------------------------------------------
def _fold_groups(v, groups, g):
    """Average each block of g consecutive channel rows of v (C, n) and
    broadcast back.  Only used when channels-per-group > 1."""
    c, n = v.shape
    m = jnp.mean(v.reshape(groups, g, n), axis=1, keepdims=True)
    return jnp.broadcast_to(m, (groups, g, n)).reshape(c, n)


def _gn_relu(x, gamma, beta, nb, groups, hw, eps):
    """GroupNorm + ReLU on a (C, nb*HW) f32 slab (batch packed on lanes).

    gamma/beta: (C, 1) per-channel affine.  Single statistics pass
    (E[x^2] - E[x]^2), all in f32.
    """
    c, l = x.shape
    g = c // groups
    if nb == 1:
        mean = jnp.mean(x, axis=1, keepdims=True)           # (C, 1)
        ex2 = jnp.mean(x * x, axis=1, keepdims=True)        # (C, 1)
        if g > 1:
            mean = _fold_groups(mean, groups, g)
            ex2 = _fold_groups(ex2, groups, g)
        var = jnp.maximum(ex2 - mean * mean, 0.0)
        scale = jax.lax.rsqrt(var + eps) * gamma             # (C, 1)
        shift = beta - mean * scale                          # (C, 1)
        return jnp.maximum(x * scale + shift, 0.0)
    # nb > 1: per-image statistics over each HW lane segment.
    x3 = x.reshape(c, nb, hw)
    mean = jnp.mean(x3, axis=2)                              # (C, nb)
    ex2 = jnp.mean(x3 * x3, axis=2)                          # (C, nb)
    if g > 1:
        mean = _fold_groups(mean, groups, g)
        ex2 = _fold_groups(ex2, groups, g)
    var = jnp.maximum(ex2 - mean * mean, 0.0)
    scale = jax.lax.rsqrt(var + eps) * gamma                 # (C, nb)
    shift = beta - mean * scale                              # (C, nb)
    scale_l = jnp.broadcast_to(scale[:, :, None], (c, nb, hw)).reshape(c, l)
    shift_l = jnp.broadcast_to(shift[:, :, None], (c, nb, hw)).reshape(c, l)
    return jnp.maximum(x * scale_l + shift_l, 0.0)


def _conv3x3_acc(x, w_ref, masks, w, l, cdt):
    """3x3 conv (stride 1, pad 1, no bias) on a (Cin, L = nb*HW) f32 slab.

    w_ref: (9, Cout, Cin) per-tap weight Ref in the MXU compute dtype.
    masks: (8, L) f32 boundary masks (center tap omitted), per-image tiled.

    Each tap is a static lane roll (XLU) + boundary-mask multiply (VPU);
    every wrap-around position (row / column / image-boundary leak) lands
    exactly on a mask zero.  Taps are consumed one at a time by 9
    accumulating matmuls -- no 9x tap slab is ever materialized; the
    accumulator stays in f32.
    """
    acc = None
    t = 0
    for dy in (-1, 0, 1):
        for dx in (-1, 0, 1):
            shift = (-(dy * w + dx)) % l
            r = pltpu.roll(x, shift=shift, axis=1) if shift else x
            if not (dy == 0 and dx == 0):
                mi = t if t < 4 else t - 1                   # center mask skipped
                r = r * masks[mi:mi + 1, :]
            part = jnp.dot(w_ref[t], r.astype(cdt),
                           preferred_element_type=jnp.float32)
            acc = part if acc is None else acc + part
            t += 1
    return acc                                               # (Cout, L) f32


# ---------------------------------------------------------------------------
# Pallas kernel: one grid step == nb images, batch packed on the lane axis
# ---------------------------------------------------------------------------
def _resblock_kernel(x_ref, masks_ref, g1_ref, b1_ref, w1_ref,
                     g2_ref, b2_ref, w2_ref, o_ref,
                     *, nb, groups1, groups2, h, w, eps, cdt):
    hw = h * w
    l = nb * hw
    masks = masks_ref[...]                                   # (8, L) f32, resident

    out = _gn_relu(x_ref[...].astype(jnp.float32),
                   g1_ref[...], b1_ref[...], nb, groups1, hw, eps)
    out = _conv3x3_acc(out, w1_ref, masks, w, l, cdt)        # (P, L) f32
    out = _gn_relu(out, g2_ref[...], b2_ref[...], nb, groups2, hw, eps)
    out = _conv3x3_acc(out, w2_ref, masks, w, l, cdt)        # (P, L) f32

    # Residual add re-reads the resident input block (no long-lived x copy).
    o_ref[...] = (out + x_ref[...].astype(jnp.float32)).astype(o_ref.dtype)


# ---------------------------------------------------------------------------
# Wrapper-side prep (tiny; jit the whole wrapper so it runs fused, once/call)
# ---------------------------------------------------------------------------
def _per_tap_weights(w_oihw, dtype):
    """OIHW (Cout, Cin, 3, 3) -> (9, Cout, Cin), tap order t = ky*3 + kx."""
    cout, cin = w_oihw.shape[0], w_oihw.shape[1]
    return jnp.transpose(w_oihw, (2, 3, 0, 1)).reshape(9, cout, cin).astype(dtype)


def _boundary_masks(h, w, nb):
    """(8, nb*H*W) f32 masks for the 8 non-center 3x3 taps, tiled per image
    along the lane axis (built with numpy -> baked as a constant)."""
    pos = np.arange(h * w)
    yy, xx = pos // w, pos % w
    rows = []
    for dy in (-1, 0, 1):
        for dx in (-1, 0, 1):
            if dy == 0 and dx == 0:
                continue
            rows.append((yy + dy >= 0) & (yy + dy < h) &
                        (xx + dx >= 0) & (xx + dx < w))
    m = np.stack(rows).astype(np.float32)                    # (8, HW)
    return jnp.asarray(np.tile(m, (1, nb)))                  # (8, nb*HW)


def _pick_images_per_step(n, hw, requested):
    """Aim for >= 2 grid steps (pipelining + v7x dual-core sharding) with a
    lane width that is a multiple of 128 (unmasked full-width stores)."""
    if requested is not None:
        nb = requested
    elif n >= 4:
        nb = max(1, n // 4)
    else:
        nb = max(1, n // 2)
    while nb < n and (n % nb != 0 or (nb * hw) % 128 != 0):
        nb += 1
    return nb


# ---------------------------------------------------------------------------
# Wrapper (NCHW in / NCHW out, like the PyTorch module)
# ---------------------------------------------------------------------------
def resblock_forward(x_nchw, params, *, images_per_step=None,
                     matmul_dtype=jnp.bfloat16):
    n, c, h, w = x_nchw.shape
    p = params["conv1_w"].shape[0]
    assert params["conv1_w"].shape[1] == c
    assert params["conv2_w"].shape[:2] == (p, p)
    assert c == p, "downsample=None requires inplanes == planes and stride == 1"
    # TODO(synk): stride>1 / downsample ResBlock variants are not implemented
    # (the odenet_mnist ResBlock default config does not use them).

    groups1, groups2 = min(32, c), min(32, p)
    assert c % groups1 == 0 and p % groups2 == 0

    hw = h * w
    nb = _pick_images_per_step(n, hw, images_per_step)
    assert n % nb == 0, "batch must be divisible by images_per_step"
    l = nb * hw

    # Batch on the lane axis: NCHW -> CNHW -> (C, N*HW).
    x_slab = jnp.transpose(x_nchw, (1, 0, 2, 3)).reshape(c, n * hw)

    masks = _boundary_masks(h, w, nb)                        # (8, L) f32
    w1 = _per_tap_weights(params["conv1_w"], matmul_dtype)   # (9, P, C)
    w2 = _per_tap_weights(params["conv2_w"], matmul_dtype)   # (9, P, P)
    g1 = params["gn1_w"].reshape(c, 1).astype(jnp.float32)
    b1 = params["gn1_b"].reshape(c, 1).astype(jnp.float32)
    g2 = params["gn2_w"].reshape(p, 1).astype(jnp.float32)
    b2 = params["gn2_b"].reshape(p, 1).astype(jnp.float32)

    kernel = functools.partial(
        _resblock_kernel, nb=nb, groups1=groups1, groups2=groups2,
        h=h, w=w, eps=EPS, cdt=matmul_dtype)

    fix2 = lambda b: (0, 0)
    fix3 = lambda b: (0, 0, 0)
    out_slab = pl.pallas_call(
        kernel,
        out_shape=jax.ShapeDtypeStruct((p, n * hw), x_nchw.dtype),
        grid_spec=pltpu.PrefetchScalarGridSpec(
            num_scalar_prefetch=0,
            grid=(n // nb,),
            in_specs=[
                pl.BlockSpec((c, l), lambda b: (0, b)),      # activations
                pl.BlockSpec((8, l), fix2),                  # boundary masks
                pl.BlockSpec((c, 1), fix2),                  # gn1 gamma
                pl.BlockSpec((c, 1), fix2),                  # gn1 beta
                pl.BlockSpec((9, p, c), fix3),               # conv1 per-tap W
                pl.BlockSpec((p, 1), fix2),                  # gn2 gamma
                pl.BlockSpec((p, 1), fix2),                  # gn2 beta
                pl.BlockSpec((9, p, p), fix3),               # conv2 per-tap W
            ],
            out_specs=pl.BlockSpec((p, l), lambda b: (0, b)),
        ),
        compiler_params=pltpu.CompilerParams(
            dimension_semantics=("parallel",)),              # batch-parallel
    )(x_slab, masks, g1, b1, w1, g2, b2, w2)

    # (P, N*HW) -> NCHW
    return jnp.transpose(out_slab.reshape(p, n, h, w), (1, 0, 2, 3))


# ---------------------------------------------------------------------------
# Pure-JAX reference (mirrors PyTorch exactly, NCHW, f32)
# ---------------------------------------------------------------------------
def _group_norm_ref(x, num_groups, w, b, eps=EPS):
    n, c, h, wd = x.shape
    xr = x.reshape(n, num_groups, c // num_groups, h, wd)
    mean = xr.mean(axis=(2, 3, 4), keepdims=True)
    var = ((xr - mean) ** 2).mean(axis=(2, 3, 4), keepdims=True)
    xn = ((xr - mean) / jnp.sqrt(var + eps)).reshape(n, c, h, wd)
    return xn * w[None, :, None, None] + b[None, :, None, None]


def _conv3x3_ref(x, w):
    return jax.lax.conv_general_dilated(
        x, w, window_strides=(1, 1), padding="SAME",
        dimension_numbers=("NCHW", "OIHW", "NCHW"))


def resblock_ref(x, params):
    c = x.shape[1]
    p = params["conv1_w"].shape[0]
    out = jax.nn.relu(_group_norm_ref(x, min(32, c),
                                      params["gn1_w"], params["gn1_b"]))
    out = _conv3x3_ref(out, params["conv1_w"])
    out = jax.nn.relu(_group_norm_ref(out, min(32, p),
                                      params["gn2_w"], params["gn2_b"]))
    out = _conv3x3_ref(out, params["conv2_w"])
    return out + x


# ---------------------------------------------------------------------------
if __name__ == "__main__":
    N, C, H, W = 2, 4, 16, 16   # inplanes = planes = 4, stride = 1
    P = C

    key = jax.random.PRNGKey(0)
    k = jax.random.split(key, 7)
    params = {
        "gn1_w": 1.0 + 0.1 * jax.random.normal(k[0], (C,), jnp.float32),
        "gn1_b": 0.1 * jax.random.normal(k[1], (C,), jnp.float32),
        "conv1_w": 0.1 * jax.random.normal(k[2], (P, C, 3, 3), jnp.float32),
        "gn2_w": 1.0 + 0.1 * jax.random.normal(k[3], (P,), jnp.float32),
        "gn2_b": 0.1 * jax.random.normal(k[4], (P,), jnp.float32),
        "conv2_w": 0.1 * jax.random.normal(k[5], (P, P, 3, 3), jnp.float32),
    }
    x = jax.random.normal(k[6], (N, C, H, W), jnp.float32)

    ref = jax.block_until_ready(resblock_ref(x, params))

    # f32 MXU-operand path: tight check of the kernel structure/semantics.
    fwd_f32 = jax.jit(functools.partial(resblock_forward,
                                        matmul_dtype=jnp.float32))
    out_f32 = jax.block_until_ready(fwd_f32(x, params))
    assert out_f32.shape == (N, P, H, W), out_f32.shape
    np.testing.assert_allclose(np.asarray(out_f32), np.asarray(ref),
                               rtol=2e-3, atol=2e-3)

    # bf16 MXU-operand path (default; native MXU rate on v6e/v7x).  GroupNorm,
    # masks, accumulation and the residual stay in f32 -> bf16-level tolerance.
    fwd_bf16 = jax.jit(functools.partial(resblock_forward,
                                         matmul_dtype=jnp.bfloat16))
    out_bf16 = jax.block_until_ready(fwd_bf16(x, params))
    assert out_bf16.shape == (N, P, H, W), out_bf16.shape
    np.testing.assert_allclose(np.asarray(out_bf16), np.asarray(ref),
                               rtol=2e-2, atol=2e-2)

    print("KERNEL_OK")
</pallas_src>

<mosaic_0001>
module attributes {stable_mosaic.version = 11 : i64} {
  func.func @_resblock_kernel(%arg0: i32, %arg1: memref<4x256xf32, #tpu.memory_space<vmem>>, %arg2: memref<8x256xf32, #tpu.memory_space<vmem>>, %arg3: memref<4x1xf32, #tpu.memory_space<vmem>>, %arg4: memref<4x1xf32, #tpu.memory_space<vmem>>, %arg5: memref<9x4x4xf32, #tpu.memory_space<vmem>>, %arg6: memref<4x1xf32, #tpu.memory_space<vmem>>, %arg7: memref<4x1xf32, #tpu.memory_space<vmem>>, %arg8: memref<9x4x4xf32, #tpu.memory_space<vmem>>, %arg9: memref<4x256xf32, #tpu.memory_space<vmem>>) attributes {dimension_semantics = [#tpu.dimension_semantics<parallel>], iteration_bounds = array<i64: 2>, scalar_prefetch = 0 : i64, scratch_operands = 0 : i64, tpu.core_type = #tpu.core_type<tc>, window_params = [{transform_indices = @transform_0, window_bounds = array<i64: 4, 256>}, {pipeline_mode = #tpu.pipeline_mode<synchronous>, transform_indices = @transform_1, window_bounds = array<i64: 8, 256>}, {pipeline_mode = #tpu.pipeline_mode<synchronous>, transform_indices = @transform_2, window_bounds = array<i64: 4, 1>}, {pipeline_mode = #tpu.pipeline_mode<synchronous>, transform_indices = @transform_3, window_bounds = array<i64: 4, 1>}, {pipeline_mode = #tpu.pipeline_mode<synchronous>, transform_indices = @transform_4, window_bounds = array<i64: 9, 4, 4>}, {pipeline_mode = #tpu.pipeline_mode<synchronous>, transform_indices = @transform_5, window_bounds = array<i64: 4, 1>}, {pipeline_mode = #tpu.pipeline_mode<synchronous>, transform_indices = @transform_6, window_bounds = array<i64: 4, 1>}, {pipeline_mode = #tpu.pipeline_mode<synchronous>, transform_indices = @transform_7, window_bounds = array<i64: 9, 4, 4>}, {transform_indices = @transform_8, window_bounds = array<i64: 4, 256>}]} {
    %c0 = arith.constant 0 : index
    %c0_0 = arith.constant 0 : index
    %0 = vector.load %arg2[%c0, %c0_0] : memref<8x256xf32, #tpu.memory_space<vmem>>, vector<8x256xf32>
    %c0_1 = arith.constant 0 : index
    %c0_2 = arith.constant 0 : index
    %1 = vector.load %arg1[%c0_1, %c0_2] : memref<4x256xf32, #tpu.memory_space<vmem>>, vector<4x256xf32>
    %c0_3 = arith.constant 0 : index
    %c0_4 = arith.constant 0 : index
    %2 = vector.load %arg3[%c0_3, %c0_4] : memref<4x1xf32, #tpu.memory_space<vmem>>, vector<4x1xf32>
    %c0_5 = arith.constant 0 : index
    %c0_6 = arith.constant 0 : index
    %3 = vector.load %arg4[%c0_5, %c0_6] : memref<4x1xf32, #tpu.memory_space<vmem>>, vector<4x1xf32>
    %cst = arith.constant dense<0.000000e+00> : vector<4xf32>
    %4 = vector.multi_reduction <add>, %1, %cst [1] : vector<4x256xf32> to vector<4xf32>
    %5 = vector.shape_cast %4 : vector<4xf32> to vector<4x1xf32>
    %cst_7 = arith.constant 2.560000e+02 : f32
    %6 = vector.broadcast %cst_7 : f32 to vector<4x1xf32>
    %7 = arith.divf %5, %6 : vector<4x1xf32>
    %8 = arith.mulf %1, %1 : vector<4x256xf32>
    %cst_8 = arith.constant dense<0.000000e+00> : vector<4xf32>
    %9 = vector.multi_reduction <add>, %8, %cst_8 [1] : vector<4x256xf32> to vector<4xf32>
    %10 = vector.shape_cast %9 : vector<4xf32> to vector<4x1xf32>
    %cst_9 = arith.constant 2.560000e+02 : f32
    %11 = vector.broadcast %cst_9 : f32 to vector<4x1xf32>
    %12 = arith.divf %10, %11 : vector<4x1xf32>
    %13 = arith.mulf %7, %7 : vector<4x1xf32>
    %14 = arith.subf %12, %13 : vector<4x1xf32>
    %cst_10 = arith.constant 0.000000e+00 : f32
    %15 = vector.broadcast %cst_10 : f32 to vector<4x1xf32>
    %16 = arith.maximumf %14, %15 : vector<4x1xf32>
    %cst_11 = arith.constant 9.99999974E-6 : f32
    %17 = vector.broadcast %cst_11 : f32 to vector<4x1xf32>
    %18 = arith.addf %16, %17 : vector<4x1xf32>
    %19 = math.rsqrt %18 : vector<4x1xf32>
    %20 = arith.mulf %19, %2 : vector<4x1xf32>
    %21 = arith.mulf %7, %20 : vector<4x1xf32>
    %22 = arith.subf %3, %21 : vector<4x1xf32>
    %23 = vector.broadcast %20 : vector<4x1xf32> to vector<4x256xf32>
    %24 = arith.mulf %1, %23 : vector<4x256xf32>
    %25 = vector.broadcast %22 : vector<4x1xf32> to vector<4x256xf32>
    %26 = arith.addf %24, %25 : vector<4x256xf32>
    %cst_12 = arith.constant 0.000000e+00 : f32
    %27 = vector.broadcast %cst_12 : f32 to vector<4x256xf32>
    %28 = arith.maximumf %26, %27 : vector<4x256xf32>
    %c17_i32 = arith.constant 17 : i32
    %29 = tpu.dynamic_rotate %28 by %c17_i32 dim 1 : vector<4x256xf32>, i32 -> vector<4x256xf32>
    %30 = vector.extract_strided_slice %0 {offsets = [0, 0], sizes = [1, 256], strides = [1, 1]} : vector<8x256xf32> to vector<1x256xf32>
    %31 = vector.broadcast %30 : vector<1x256xf32> to vector<4x256xf32>
    %32 = arith.mulf %29, %31 : vector<4x256xf32>
    %c0_13 = arith.constant 0 : index
    %c0_14 = arith.constant 0 : index
    %c0_15 = arith.constant 0 : index
    %33 = vector.load %arg5[%c0_13, %c0_14, %c0_15] : memref<9x4x4xf32, #tpu.memory_space<vmem>>, vector<1x4x4xf32>
    %34 = vector.shape_cast %33 : vector<1x4x4xf32> to vector<4x4xf32>
    %cst_16 = arith.constant dense<0.000000e+00> : vector<4x256xf32>
    %35 = tpu.matmul %34, %32, %cst_16 {dimension_numbers = #tpu.dot_dimension_numbers<[1], [0], [0], [1], [0, 0, 1, 1], [], []>} : vector<4x4xf32>, vector<4x256xf32>, vector<4x256xf32> -> vector<4x256xf32>
    %c16_i32 = arith.constant 16 : i32
    %36 = tpu.dynamic_rotate %28 by %c16_i32 dim 1 : vector<4x256xf32>, i32 -> vector<4x256xf32>
    %37 = vector.extract_strided_slice %0 {offsets = [1, 0], sizes = [1, 256], strides = [1, 1]} : vector<8x256xf32> to vector<1x256xf32>
    %38 = vector.broadcast %37 : vector<1x256xf32> to vector<4x256xf32>
    %39 = arith.mulf %36, %38 : vector<4x256xf32>
    %c1 = arith.constant 1 : index
    %c0_17 = arith.constant 0 : index
    %c0_18 = arith.constant 0 : index
    %40 = vector.load %arg5[%c1, %c0_17, %c0_18] : memref<9x4x4xf32, #tpu.memory_space<vmem>>, vector<1x4x4xf32>
    %41 = vector.shape_cast %40 : vector<1x4x4xf32> to vector<4x4xf32>
    %cst_19 = arith.constant dense<0.000000e+00> : vector<4x256xf32>
    %42 = tpu.matmul %41, %39, %cst_19 {dimension_numbers = #tpu.dot_dimension_numbers<[1], [0], [0], [1], [0, 0, 1, 1], [], []>} : vector<4x4xf32>, vector<4x256xf32>, vector<4x256xf32> -> vector<4x256xf32>
    %43 = arith.addf %35, %42 : vector<4x256xf32>
    %c15_i32 = arith.constant 15 : i32
    %44 = tpu.dynamic_rotate %28 by %c15_i32 dim 1 : vector<4x256xf32>, i32 -> vector<4x256xf32>
    %45 = vector.extract_strided_slice %0 {offsets = [2, 0], sizes = [1, 256], strides = [1, 1]} : vector<8x256xf32> to vector<1x256xf32>
    %46 = vector.broadcast %45 : vector<1x256xf32> to vector<4x256xf32>
    %47 = arith.mulf %44, %46 : vector<4x256xf32>
    %c2 = arith.constant 2 : index
    %c0_20 = arith.constant 0 : index
    %c0_21 = arith.constant 0 : index
    %48 = vector.load %arg5[%c2, %c0_20, %c0_21] : memref<9x4x4xf32, #tpu.memory_space<vmem>>, vector<1x4x4xf32>
    %49 = vector.shape_cast %48 : vector<1x4x4xf32> to vector<4x4xf32>
    %cst_22 = arith.constant dense<0.000000e+00> : vector<4x256xf32>
    %50 = tpu.matmul %49, %47, %cst_22 {dimension_numbers = #tpu.dot_dimension_numbers<[1], [0], [0], [1], [0, 0, 1, 1], [], []>} : vector<4x4xf32>, vector<4x256xf32>, vector<4x256xf32> -> vector<4x256xf32>
    %51 = arith.addf %43, %50 : vector<4x256xf32>
    %c1_i32 = arith.constant 1 : i32
    %52 = tpu.dynamic_rotate %28 by %c1_i32 dim 1 : vector<4x256xf32>, i32 -> vector<4x256xf32>
    %53 = vector.extract_strided_slice %0 {offsets = [3, 0], sizes = [1, 256], strides = [1, 1]} : vector<8x256xf32> to vector<1x256xf32>
    %54 = vector.broadcast %53 : vector<1x256xf32> to vector<4x256xf32>
    %55 = arith.mulf %52, %54 : vector<4x256xf32>
    %c3 = arith.constant 3 : index
    %c0_23 = arith.constant 0 : index
    %c0_24 = arith.constant 0 : index
    %56 = vector.load %arg5[%c3, %c0_23, %c0_24] : memref<9x4x4xf32, #tpu.memory_space<vmem>>, vector<1x4x4xf32>
    %57 = vector.shape_cast %56 : vector<1x4x4xf32> to vector<4x4xf32>
    %cst_25 = arith.constant dense<0.000000e+00> : vector<4x256xf32>
    %58 = tpu.matmul %57, %55, %cst_25 {dimension_numbers = #tpu.dot_dimension_numbers<[1], [0], [0], [1], [0, 0, 1, 1], [], []>} : vector<4x4xf32>, vector<4x256xf32>, vector<4x256xf32> -> vector<4x256xf32>
    %59 = arith.addf %51, %58 : vector<4x256xf32>
    %c4 = arith.constant 4 : index
    %c0_26 = arith.constant 0 : index
    %c0_27 = arith.constant 0 : index
    %60 = vector.load %arg5[%c4, %c0_26, %c0_27] : memref<9x4x4xf32, #tpu.memory_space<vmem>>, vector<1x4x4xf32>
    %61 = vector.shape_cast %60 : vector<1x4x4xf32> to vector<4x4xf32>
    %cst_28 = arith.constant dense<0.000000e+00> : vector<4x256xf32>
    %62 = tpu.matmul %61, %28, %cst_28 {dimension_numbers = #tpu.dot_dimension_numbers<[1], [0], [0], [1], [0, 0, 1, 1], [], []>} : vector<4x4xf32>, vector<4x256xf32>, vector<4x256xf32> -> vector<4x256xf32>
    %63 = arith.addf %59, %62 : vector<4x256xf32>
    %c255_i32 = arith.constant 255 : i32
    %64 = tpu.dynamic_rotate %28 by %c255_i32 dim 1 : vector<4x256xf32>, i32 -> vector<4x256xf32>
    %65 = vector.extract_strided_slice %0 {offsets = [4, 0], sizes = [1, 256], strides = [1, 1]} : vector<8x256xf32> to vector<1x256xf32>
    %66 = vector.broadcast %65 : vector<1x256xf32> to vector<4x256xf32>
    %67 = arith.mulf %64, %66 : vector<4x256xf32>
    %c5 = arith.constant 5 : index
    %c0_29 = arith.constant 0 : index
    %c0_30 = arith.constant 0 : index
    %68 = vector.load %arg5[%c5, %c0_29, %c0_30] : memref<9x4x4xf32, #tpu.memory_space<vmem>>, vector<1x4x4xf32>
    %69 = vector.shape_cast %68 : vector<1x4x4xf32> to vector<4x4xf32>
    %cst_31 = arith.constant dense<0.000000e+00> : vector<4x256xf32>
    %70 = tpu.matmul %69, %67, %cst_31 {dimension_numbers = #tpu.dot_dimension_numbers<[1], [0], [0], [1], [0, 0, 1, 1], [], []>} : vector<4x4xf32>, vector<4x256xf32>, vector<4x256xf32> -> vector<4x256xf32>
    %71 = arith.addf %63, %70 : vector<4x256xf32>
    %c241_i32 = arith.constant 241 : i32
    %72 = tpu.dynamic_rotate %28 by %c241_i32 dim 1 : vector<4x256xf32>, i32 -> vector<4x256xf32>
    %73 = vector.extract_strided_slice %0 {offsets = [5, 0], sizes = [1, 256], strides = [1, 1]} : vector<8x256xf32> to vector<1x256xf32>
    %74 = vector.broadcast %73 : vector<1x256xf32> to vector<4x256xf32>
    %75 = arith.mulf %72, %74 : vector<4x256xf32>
    %c6 = arith.constant 6 : index
    %c0_32 = arith.constant 0 : index
    %c0_33 = arith.constant 0 : index
    %76 = vector.load %arg5[%c6, %c0_32, %c0_33] : memref<9x4x4xf32, #tpu.memory_space<vmem>>, vector<1x4x4xf32>
    %77 = vector.shape_cast %76 : vector<1x4x4xf32> to vector<4x4xf32>
    %cst_34 = arith.constant dense<0.000000e+00> : vector<4x256xf32>
    %78 = tpu.matmul %77, %75, %cst_34 {dimension_numbers = #tpu.dot_dimension_numbers<[1], [0], [0], [1], [0, 0, 1, 1], [], []>} : vector<4x4xf32>, vector<4x256xf32>, vector<4x256xf32> -> vector<4x256xf32>
    %79 = arith.addf %71, %78 : vector<4x256xf32>
    %c240_i32 = arith.constant 240 : i32
    %80 = tpu.dynamic_rotate %28 by %c240_i32 dim 1 : vector<4x256xf32>, i32 -> vector<4x256xf32>
    %81 = vector.extract_strided_slice %0 {offsets = [6, 0], sizes = [1, 256], strides = [1, 1]} : vector<8x256xf32> to vector<1x256xf32>
    %82 = vector.broadcast %81 : vector<1x256xf32> to vector<4x256xf32>
    %83 = arith.mulf %80, %82 : vector<4x256xf32>
    %c7 = arith.constant 7 : index
    %c0_35 = arith.constant 0 : index
    %c0_36 = arith.constant 0 : index
    %84 = vector.load %arg5[%c7, %c0_35, %c0_36] : memref<9x4x4xf32, #tpu.memory_space<vmem>>, vector<1x4x4xf32>
    %85 = vector.shape_cast %84 : vector<1x4x4xf32> to vector<4x4xf32>
    %cst_37 = arith.constant dense<0.000000e+00> : vector<4x256xf32>
    %86 = tpu.matmul %85, %83, %cst_37 {dimension_numbers = #tpu.dot_dimension_numbers<[1], [0], [0], [1], [0, 0, 1, 1], [], []>} : vector<4x4xf32>, vector<4x256xf32>, vector<4x256xf32> -> vector<4x256xf32>
    %87 = arith.addf %79, %86 : vector<4x256xf32>
    %c239_i32 = arith.constant 239 : i32
    %88 = tpu.dynamic_rotate %28 by %c239_i32 dim 1 : vector<4x256xf32>, i32 -> vector<4x256xf32>
    %89 = vector.extract_strided_slice %0 {offsets = [7, 0], sizes = [1, 256], strides = [1, 1]} : vector<8x256xf32> to vector<1x256xf32>
    %90 = vector.broadcast %89 : vector<1x256xf32> to vector<4x256xf32>
    %91 = arith.mulf %88, %90 : vector<4x256xf32>
    %c8 = arith.constant 8 : index
    %c0_38 = arith.constant 0 : index
    %c0_39 = arith.constant 0 : index
    %92 = vector.load %arg5[%c8, %c0_38, %c0_39] : memref<9x4x4xf32, #tpu.memory_space<vmem>>, vector<1x4x4xf32>
    %93 = vector.shape_cast %92 : vector<1x4x4xf32> to vector<4x4xf32>
    %cst_40 = arith.constant dense<0.000000e+00> : vector<4x256xf32>
    %94 = tpu.matmul %93, %91, %cst_40 {dimension_numbers = #tpu.dot_dimension_numbers<[1], [0], [0], [1], [0, 0, 1, 1], [], []>} : vector<4x4xf32>, vector<4x256xf32>, vector<4x256xf32> -> vector<4x256xf32>
    %95 = arith.addf %87, %94 : vector<4x256xf32>
    %c0_41 = arith.constant 0 : index
    %c0_42 = arith.constant 0 : index
    %96 = vector.load %arg6[%c0_41, %c0_42] : memref<4x1xf32, #tpu.memory_space<vmem>>, vector<4x1xf32>
    %c0_43 = arith.constant 0 : index
    %c0_44 = arith.constant 0 : index
    %97 = vector.load %arg7[%c0_43, %c0_44] : memref<4x1xf32, #tpu.memory_space<vmem>>, vector<4x1xf32>
    %cst_45 = arith.constant dense<0.000000e+00> : vector<4xf32>
    %98 = vector.multi_reduction <add>, %95, %cst_45 [1] : vector<4x256xf32> to vector<4xf32>
    %99 = vector.shape_cast %98 : vector<4xf32> to vector<4x1xf32>
    %cst_46 = arith.constant 2.560000e+02 : f32
    %100 = vector.broadcast %cst_46 : f32 to vector<4x1xf32>
    %101 = arith.divf %99, %100 : vector<4x1xf32>
    %102 = arith.mulf %95, %95 : vector<4x256xf32>
    %cst_47 = arith.constant dense<0.000000e+00> : vector<4xf32>
    %103 = vector.multi_reduction <add>, %102, %cst_47 [1] : vector<4x256xf32> to vector<4xf32>
    %104 = vector.shape_cast %103 : vector<4xf32> to vector<4x1xf32>
    %cst_48 = arith.constant 2.560000e+02 : f32
    %105 = vector.broadcast %cst_48 : f32 to vector<4x1xf32>
    %106 = arith.divf %104, %105 : vector<4x1xf32>
    %107 = arith.mulf %101, %101 : vector<4x1xf32>
    %108 = arith.subf %106, %107 : vector<4x1xf32>
    %cst_49 = arith.constant 0.000000e+00 : f32
    %109 = vector.broadcast %cst_49 : f32 to vector<4x1xf32>
    %110 = arith.maximumf %108, %109 : vector<4x1xf32>
    %cst_50 = arith.constant 9.99999974E-6 : f32
    %111 = vector.broadcast %cst_50 : f32 to vector<4x1xf32>
    %112 = arith.addf %110, %111 : vector<4x1xf32>
    %113 = math.rsqrt %112 : vector<4x1xf32>
    %114 = arith.mulf %113, %96 : vector<4x1xf32>
    %115 = arith.mulf %101, %114 : vector<4x1xf32>
    %116 = arith.subf %97, %115 : vector<4x1xf32>
    %117 = vector.broadcast %114 : vector<4x1xf32> to vector<4x256xf32>
    %118 = arith.mulf %95, %117 : vector<4x256xf32>
    %119 = vector.broadcast %116 : vector<4x1xf32> to vector<4x256xf32>
    %120 = arith.addf %118, %119 : vector<4x256xf32>
    %cst_51 = arith.constant 0.000000e+00 : f32
    %121 = vector.broadcast %cst_51 : f32 to vector<4x256xf32>
    %122 = arith.maximumf %120, %121 : vector<4x256xf32>
    %c17_i32_52 = arith.constant 17 : i32
    %123 = tpu.dynamic_rotate %122 by %c17_i32_52 dim 1 : vector<4x256xf32>, i32 -> vector<4x256xf32>
    %124 = vector.extract_strided_slice %0 {offsets = [0, 0], sizes = [1, 256], strides = [1, 1]} : vector<8x256xf32> to vector<1x256xf32>
    %125 = vector.broadcast %124 : vector<1x256xf32> to vector<4x256xf32>
    %126 = arith.mulf %123, %125 : vector<4x256xf32>
    %c0_53 = arith.constant 0 : index
    %c0_54 = arith.constant 0 : index
    %c0_55 = arith.constant 0 : index
    %127 = vector.load %arg8[%c0_53, %c0_54, %c0_55] : memref<9x4x4xf32, #tpu.memory_space<vmem>>, vector<1x4x4xf32>
    %128 = vector.shape_cast %127 : vector<1x4x4xf32> to vector<4x4xf32>
    %cst_56 = arith.constant dense<0.000000e+00> : vector<4x256xf32>
    %129 = tpu.matmul %128, %126, %cst_56 {dimension_numbers = #tpu.dot_dimension_numbers<[1], [0], [0], [1], [0, 0, 1, 1], [], []>} : vector<4x4xf32>, vector<4x256xf32>, vector<4x256xf32> -> vector<4x256xf32>
    %c16_i32_57 = arith.constant 16 : i32
    %130 = tpu.dynamic_rotate %122 by %c16_i32_57 dim 1 : vector<4x256xf32>, i32 -> vector<4x256xf32>
    %131 = vector.extract_strided_slice %0 {offsets = [1, 0], sizes = [1, 256], strides = [1, 1]} : vector<8x256xf32> to vector<1x256xf32>
    %132 = vector.broadcast %131 : vector<1x256xf32> to vector<4x256xf32>
    %133 = arith.mulf %130, %132 : vector<4x256xf32>
    %c1_58 = arith.constant 1 : index
    %c0_59 = arith.constant 0 : index
    %c0_60 = arith.constant 0 : index
    %134 = vector.load %arg8[%c1_58, %c0_59, %c0_60] : memref<9x4x4xf32, #tpu.memory_space<vmem>>, vector<1x4x4xf32>
    %135 = vector.shape_cast %134 : vector<1x4x4xf32> to vector<4x4xf32>
    %cst_61 = arith.constant dense<0.000000e+00> : vector<4x256xf32>
    %136 = tpu.matmul %135, %133, %cst_61 {dimension_numbers = #tpu.dot_dimension_numbers<[1], [0], [0], [1], [0, 0, 1, 1], [], []>} : vector<4x4xf32>, vector<4x256xf32>, vector<4x256xf32> -> vector<4x256xf32>
    %137 = arith.addf %129, %136 : vector<4x256xf32>
    %c15_i32_62 = arith.constant 15 : i32
    %138 = tpu.dynamic_rotate %122 by %c15_i32_62 dim 1 : vector<4x256xf32>, i32 -> vector<4x256xf32>
    %139 = vector.extract_strided_slice %0 {offsets = [2, 0], sizes = [1, 256], strides = [1, 1]} : vector<8x256xf32> to vector<1x256xf32>
    %140 = vector.broadcast %139 : vector<1x256xf32> to vector<4x256xf32>
    %141 = arith.mulf %138, %140 : vector<4x256xf32>
    %c2_63 = arith.constant 2 : index
    %c0_64 = arith.constant 0 : index
    %c0_65 = arith.constant 0 : index
    %142 = vector.load %arg8[%c2_63, %c0_64, %c0_65] : memref<9x4x4xf32, #tpu.memory_space<vmem>>, vector<1x4x4xf32>
    %143 = vector.shape_cast %142 : vector<1x4x4xf32> to vector<4x4xf32>
    %cst_66 = arith.constant dense<0.000000e+00> : vector<4x256xf32>
    %144 = tpu.matmul %143, %141, %cst_66 {dimension_numbers = #tpu.dot_dimension_numbers<[1], [0], [0], [1], [0, 0, 1, 1], [], []>} : vector<4x4xf32>, vector<4x256xf32>, vector<4x256xf32> -> vector<4x256xf32>
    %145 = arith.addf %137, %144 : vector<4x256xf32>
    %c1_i32_67 = arith.constant 1 : i32
    %146 = tpu.dynamic_rotate %122 by %c1_i32_67 dim 1 : vector<4x256xf32>, i32 -> vector<4x256xf32>
    %147 = vector.extract_strided_slice %0 {offsets = [3, 0], sizes = [1, 256], strides = [1, 1]} : vector<8x256xf32> to vector<1x256xf32>
    %148 = vector.broadcast %147 : vector<1x256xf32> to vector<4x256xf32>
    %149 = arith.mulf %146, %148 : vector<4x256xf32>
    %c3_68 = arith.constant 3 : index
    %c0_69 = arith.constant 0 : index
    %c0_70 = arith.constant 0 : index
    %150 = vector.load %arg8[%c3_68, %c0_69, %c0_70] : memref<9x4x4xf32, #tpu.memory_space<vmem>>, vector<1x4x4xf32>
    %151 = vector.shape_cast %150 : vector<1x4x4xf32> to vector<4x4xf32>
    %cst_71 = arith.constant dense<0.000000e+00> : vector<4x256xf32>
    %152 = tpu.matmul %151, %149, %cst_71 {dimension_numbers = #tpu.dot_dimension_numbers<[1], [0], [0], [1], [0, 0, 1, 1], [], []>} : vector<4x4xf32>, vector<4x256xf32>, vector<4x256xf32> -> vector<4x256xf32>
    %153 = arith.addf %145, %152 : vector<4x256xf32>
    %c4_72 = arith.constant 4 : index
    %c0_73 = arith.constant 0 : index
    %c0_74 = arith.constant 0 : index
    %154 = vector.load %arg8[%c4_72, %c0_73, %c0_74] : memref<9x4x4xf32, #tpu.memory_space<vmem>>, vector<1x4x4xf32>
    %155 = vector.shape_cast %154 : vector<1x4x4xf32> to vector<4x4xf32>
    %cst_75 = arith.constant dense<0.000000e+00> : vector<4x256xf32>
    %156 = tpu.matmul %155, %122, %cst_75 {dimension_numbers = #tpu.dot_dimension_numbers<[1], [0], [0], [1], [0, 0, 1, 1], [], []>} : vector<4x4xf32>, vector<4x256xf32>, vector<4x256xf32> -> vector<4x256xf32>
    %157 = arith.addf %153, %156 : vector<4x256xf32>
    %c255_i32_76 = arith.constant 255 : i32
    %158 = tpu.dynamic_rotate %122 by %c255_i32_76 dim 1 : vector<4x256xf32>, i32 -> vector<4x256xf32>
    %159 = vector.extract_strided_slice %0 {offsets = [4, 0], sizes = [1, 256], strides = [1, 1]} : vector<8x256xf32> to vector<1x256xf32>
    %160 = vector.broadcast %159 : vector<1x256xf32> to vector<4x256xf32>
    %161 = arith.mulf %158, %160 : vector<4x256xf32>
    %c5_77 = arith.constant 5 : index
    %c0_78 = arith.constant 0 : index
    %c0_79 = arith.constant 0 : index
    %162 = vector.load %arg8[%c5_77, %c0_78, %c0_79] : memref<9x4x4xf32, #tpu.memory_space<vmem>>, vector<1x4x4xf32>
    %163 = vector.shape_cast %162 : vector<1x4x4xf32> to vector<4x4xf32>
    %cst_80 = arith.constant dense<0.000000e+00> : vector<4x256xf32>
    %164 = tpu.matmul %163, %161, %cst_80 {dimension_numbers = #tpu.dot_dimension_numbers<[1], [0], [0], [1], [0, 0, 1, 1], [], []>} : vector<4x4xf32>, vector<4x256xf32>, vector<4x256xf32> -> vector<4x256xf32>
    %165 = arith.addf %157, %164 : vector<4x256xf32>
    %c241_i32_81 = arith.constant 241 : i32
    %166 = tpu.dynamic_rotate %122 by %c241_i32_81 dim 1 : vector<4x256xf32>, i32 -> vector<4x256xf32>
    %167 = vector.extract_strided_slice %0 {offsets = [5, 0], sizes = [1, 256], strides = [1, 1]} : vector<8x256xf32> to vector<1x256xf32>
    %168 = vector.broadcast %167 : vector<1x256xf32> to vector<4x256xf32>
    %169 = arith.mulf %166, %168 : vector<4x256xf32>
    %c6_82 = arith.constant 6 : index
    %c0_83 = arith.constant 0 : index
    %c0_84 = arith.constant 0 : index
    %170 = vector.load %arg8[%c6_82, %c0_83, %c0_84] : memref<9x4x4xf32, #tpu.memory_space<vmem>>, vector<1x4x4xf32>
    %171 = vector.shape_cast %170 : vector<1x4x4xf32> to vector<4x4xf32>
    %cst_85 = arith.constant dense<0.000000e+00> : vector<4x256xf32>
    %172 = tpu.matmul %171, %169, %cst_85 {dimension_numbers = #tpu.dot_dimension_numbers<[1], [0], [0], [1], [0, 0, 1, 1], [], []>} : vector<4x4xf32>, vector<4x256xf32>, vector<4x256xf32> -> vector<4x256xf32>
    %173 = arith.addf %165, %172 : vector<4x256xf32>
    %c240_i32_86 = arith.constant 240 : i32
    %174 = tpu.dynamic_rotate %122 by %c240_i32_86 dim 1 : vector<4x256xf32>, i32 -> vector<4x256xf32>
    %175 = vector.extract_strided_slice %0 {offsets = [6, 0], sizes = [1, 256], strides = [1, 1]} : vector<8x256xf32> to vector<1x256xf32>
    %176 = vector.broadcast %175 : vector<1x256xf32> to vector<4x256xf32>
    %177 = arith.mulf %174, %176 : vector<4x256xf32>
    %c7_87 = arith.constant 7 : index
    %c0_88 = arith.constant 0 : index
    %c0_89 = arith.constant 0 : index
    %178 = vector.load %arg8[%c7_87, %c0_88, %c0_89] : memref<9x4x4xf32, #tpu.memory_space<vmem>>, vector<1x4x4xf32>
    %179 = vector.shape_cast %178 : vector<1x4x4xf32> to vector<4x4xf32>
    %cst_90 = arith.constant dense<0.000000e+00> : vector<4x256xf32>
    %180 = tpu.matmul %179, %177, %cst_90 {dimension_numbers = #tpu.dot_dimension_numbers<[1], [0], [0], [1], [0, 0, 1, 1], [], []>} : vector<4x4xf32>, vector<4x256xf32>, vector<4x256xf32> -> vector<4x256xf32>
    %181 = arith.addf %173, %180 : vector<4x256xf32>
    %c239_i32_91 = arith.constant 239 : i32
    %182 = tpu.dynamic_rotate %122 by %c239_i32_91 dim 1 : vector<4x256xf32>, i32 -> vector<4x256xf32>
    %183 = vector.extract_strided_slice %0 {offsets = [7, 0], sizes = [1, 256], strides = [1, 1]} : vector<8x256xf32> to vector<1x256xf32>
    %184 = vector.broadcast %183 : vector<1x256xf32> to vector<4x256xf32>
    %185 = arith.mulf %182, %184 : vector<4x256xf32>
    %c8_92 = arith.constant 8 : index
    %c0_93 = arith.constant 0 : index
    %c0_94 = arith.constant 0 : index
    %186 = vector.load %arg8[%c8_92, %c0_93, %c0_94] : memref<9x4x4xf32, #tpu.memory_space<vmem>>, vector<1x4x4xf32>
    %187 = vector.shape_cast %186 : vector<1x4x4xf32> to vector<4x4xf32>
    %cst_95 = arith.constant dense<0.000000e+00> : vector<4x256xf32>
    %188 = tpu.matmul %187, %185, %cst_95 {dimension_numbers = #tpu.dot_dimension_numbers<[1], [0], [0], [1], [0, 0, 1, 1], [], []>} : vector<4x4xf32>, vector<4x256xf32>, vector<4x256xf32> -> vector<4x256xf32>
    %189 = arith.addf %181, %188 : vector<4x256xf32>
    %c0_96 = arith.constant 0 : index
    %c0_97 = arith.constant 0 : index
    %190 = vector.load %arg1[%c0_96, %c0_97] : memref<4x256xf32, #tpu.memory_space<vmem>>, vector<4x256xf32>
    %191 = arith.addf %189, %190 : vector<4x256xf32>
    %c0_98 = arith.constant 0 : index
    %c0_99 = arith.constant 0 : index
    %192 = vector.load %arg9[%c0_98, %c0_99] : memref<4x256xf32, #tpu.memory_space<vmem>>, vector<4x256xf32>
    tpu.vector_store %arg9[%c0_98, %c0_99], %191 {strides = array<i32>} : memref<4x256xf32, #tpu.memory_space<vmem>>, vector<4x256xf32>,
    return
  }
  func.func @transform_0(%arg0: i32) -> (i32, i32) {
    %c0_i32 = arith.constant 0 : i32
    %c0_i32_0 = arith.constant 0 : i32
    return %c0_i32, %arg0 : i32, i32
  }
  func.func @transform_1(%arg0: i32) -> (i32, i32) {
    %c0_i32 = arith.constant 0 : i32
    %c0_i32_0 = arith.constant 0 : i32
    %c0_i32_1 = arith.constant 0 : i32
    return %c0_i32, %c0_i32_0 : i32, i32
  }
  func.func @transform_2(%arg0: i32) -> (i32, i32) {
    %c0_i32 = arith.constant 0 : i32
    %c0_i32_0 = arith.constant 0 : i32
    %c0_i32_1 = arith.constant 0 : i32
    return %c0_i32, %c0_i32_0 : i32, i32
  }
  func.func @transform_3(%arg0: i32) -> (i32, i32) {
    %c0_i32 = arith.constant 0 : i32
    %c0_i32_0 = arith.constant 0 : i32
    %c0_i32_1 = arith.constant 0 : i32
    return %c0_i32, %c0_i32_0 : i32, i32
  }
  func.func @transform_4(%arg0: i32) -> (i32, i32, i32) {
    %c0_i32 = arith.constant 0 : i32
    %c0_i32_0 = arith.constant 0 : i32
    %c0_i32_1 = arith.constant 0 : i32
    %c0_i32_2 = arith.constant 0 : i32
    return %c0_i32, %c0_i32_0, %c0_i32_1 : i32, i32, i32
  }
  func.func @transform_5(%arg0: i32) -> (i32, i32) {
    %c0_i32 = arith.constant 0 : i32
    %c0_i32_0 = arith.constant 0 : i32
    %c0_i32_1 = arith.constant 0 : i32
    return %c0_i32, %c0_i32_0 : i32, i32
  }
  func.func @transform_6(%arg0: i32) -> (i32, i32) {
    %c0_i32 = arith.constant 0 : i32
    %c0_i32_0 = arith.constant 0 : i32
    %c0_i32_1 = arith.constant 0 : i32
    return %c0_i32, %c0_i32_0 : i32, i32
  }
  func.func @transform_7(%arg0: i32) -> (i32, i32, i32) {
    %c0_i32 = arith.constant 0 : i32
    %c0_i32_0 = arith.constant 0 : i32
    %c0_i32_1 = arith.constant 0 : i32
    %c0_i32_2 = arith.constant 0 : i32
    return %c0_i32, %c0_i32_0, %c0_i32_1 : i32, i32, i32
  }
  func.func @transform_8(%arg0: i32) -> (i32, i32) {
    %c0_i32 = arith.constant 0 : i32
    %c0_i32_0 = arith.constant 0 : i32
    return %c0_i32, %arg0 : i32, i32
  }
}

</mosaic_0001>

<llo_original>
// kernel: resblock_forward.1
$region0: #{resblock_forward.1}
  #allocation0 [shape = 'u32[]', space=smem, size = 0x4, offset = 0x4, fixed_abs, tag = 'smem constant byte address 0x4 - core index']
  #allocation1 [shape = 'u32[144,128]{1,0:T(1,128)}', space=vmem, size = 0x12000, scoped, tag = 'internal scratch']
  %s0 = inlined_call_operand.vmem [shape: f32[4,512], index: 0, kind: input, shape index: {}]
  %s1 = inlined_call_operand.vmem [shape: f32[8,256], index: 1, kind: input, shape index: {}]
  %s2 = inlined_call_operand.vmem [shape: f32[4,1], index: 2, kind: input, shape index: {}]
  %s3 = inlined_call_operand.vmem [shape: f32[4,1], index: 3, kind: input, shape index: {}]
  %s4 = inlined_call_operand.vmem [shape: f32[9,4,4], index: 4, kind: input, shape index: {}]
  %s5 = inlined_call_operand.vmem [shape: f32[4,1], index: 5, kind: input, shape index: {}]
  %s6 = inlined_call_operand.vmem [shape: f32[4,1], index: 6, kind: input, shape index: {}]
  %s7 = inlined_call_operand.vmem [shape: f32[9,4,4], index: 7, kind: input, shape index: {}]
  %s8 = inlined_call_operand.vmem [shape: f32[4,512], index: 8, kind: output, shape index: {}]
  %s9 = sld [smem:[#allocation0]]
  $region65: #{resblock_forward.1} parent=0
    _
  %s11 = ssub.s32 1, %s9
  %s12 = scalar_select 0, %s11, %s9
  loop: start=0, step=1, limit=4
  $region2: #{resblock_forward.1} parent=0 // loop_pre_header
    _
  $region3: #{resblock_forward.1} parent=0 // loop_header
    %s14 = sphi 0, %s18
    %p15 = scmp.ge.s32.totalorder %s14, 4
    %s24 = sphi 0, %s26
    %s27 = sphi 0, %s24
    %s28 = sphi 0, %s27
    %s44 = sphi 0, %s28
    %s48 = sphi 0, %s48
    %s50 = sphi 0, %s48
    %s51 = sphi 0, %s50
    %s65 = sphi 0, %s51
    %s69 = sphi 0, %s69
    %s71 = sphi 0, %s69
    %s72 = sphi 0, %s71
    %s86 = sphi 0, %s72
    %s90 = sphi 0, %s90
    %s92 = sphi 0, %s90
    %s93 = sphi 0, %s92
    %s107 = sphi 0, %s93
    %s111 = sphi 0, %s111
    %s113 = sphi 0, %s111
    %s114 = sphi 0, %s113
    %s128 = sphi 0, %s114
    %s132 = sphi 0, %s132
    %s134 = sphi 0, %s132
    %s135 = sphi 0, %s134
    %s149 = sphi 0, %s135
    %s153 = sphi 0, %s153
    %s155 = sphi 0, %s153
    %s156 = sphi 0, %s155
    %s170 = sphi 0, %s156
    %s174 = sphi 0, %s174
    %s176 = sphi 0, %s174
    %s177 = sphi 0, %s176
    %s191 = sphi 0, %s177
    %s197 = sphi 0, %s199
    %s200 = sphi 0, %s197
    %s201 = sphi 0, %s200
    %s217 = sphi 0, %s201
  $region4: #{resblock_forward.1} parent=0 // loop_header_branch
    %17 = sbr.rel (%p15) target = $region8
  $region5: #{resblock_forward.1} parent=0 // loop_body
    %s19 = ssub.s32 %s14, 1
    %s20 = ssub.s32 %s14, 2
    %s21 = sadd.s32 %s14, 1
    %s22 = ssub.s32 %s14, %s21
    %p23 = scmp.eq.s32.totalorder %s22, 0
    %s25 = sadd.s32 %s24, 1
    %s26 = scalar_select %p23, %s24, %s25
    %p29 = pneg %p23
    %p30 = scmp.eq.s32.totalorder %s14, 1
    %p31 = por %p29, %p30
    %p32 = scmp.ne.s32.totalorder %s24, %s27
    %p33 = scmp.eq.s32.totalorder %s14, 0
    %p34 = por %p32, %p33
    %p35 = scmp.ne.s32.totalorder %s24, %s27
    %p36 = scmp.eq.s32.totalorder %s19, 1
    %p37 = por %p35, %p36
    %p38 = scmp.ne.s32.totalorder %s27, %s28
    %p39 = scmp.eq.s32.totalorder %s19, 0
    %p40 = por %p38, %p39
    %p41 = scmp.ne.s32.totalorder %s27, %s28
    %p42 = scmp.eq.s32.totalorder %s20, 1
    %p43 = por %p41, %p42
    %p45 = scmp.ne.s32.totalorder %s28, %s44
    %p46 = scmp.eq.s32.totalorder %s20, 0
    %p47 = por %p45, %p46
    %s49 = sadd.s32 %s48, 1
    %p52 = scmp.eq.s32.totalorder %s14, 1
    %p53 = scmp.ne.s32.totalorder %s48, %s50
    %p54 = scmp.eq.s32.totalorder %s14, 0
    %p55 = por %p53, %p54
    %p56 = scmp.ne.s32.totalorder %s48, %s50
    %p57 = scmp.eq.s32.totalorder %s19, 1
    %p58 = por %p56, %p57
    %p59 = scmp.ne.s32.totalorder %s50, %s51
    %p60 = scmp.eq.s32.totalorder %s19, 0
    %p61 = por %p59, %p60
    %p62 = scmp.ne.s32.totalorder %s50, %s51
    %p63 = scmp.eq.s32.totalorder %s20, 1
    %p64 = por %p62, %p63
    %p66 = scmp.ne.s32.totalorder %s51, %s65
    %p67 = scmp.eq.s32.totalorder %s20, 0
    %p68 = por %p66, %p67
    %s70 = sadd.s32 %s69, 1
    %p73 = scmp.eq.s32.totalorder %s14, 1
    %p74 = scmp.ne.s32.totalorder %s69, %s71
    %p75 = scmp.eq.s32.totalorder %s14, 0
    %p76 = por %p74, %p75
    %p77 = scmp.ne.s32.totalorder %s69, %s71
    %p78 = scmp.eq.s32.totalorder %s19, 1
    %p79 = por %p77, %p78
    %p80 = scmp.ne.s32.totalorder %s71, %s72
    %p81 = scmp.eq.s32.totalorder %s19, 0
    %p82 = por %p80, %p81
    %p83 = scmp.ne.s32.totalorder %s71, %s72
    %p84 = scmp.eq.s32.totalorder %s20, 1
    %p85 = por %p83, %p84
    %p87 = scmp.ne.s32.totalorder %s72, %s86
    %p88 = scmp.eq.s32.totalorder %s20, 0
    %p89 = por %p87, %p88
    %s91 = sadd.s32 %s90, 1
    %p94 = scmp.eq.s32.totalorder %s14, 1
    %p95 = scmp.ne.s32.totalorder %s90, %s92
    %p96 = scmp.eq.s32.totalorder %s14, 0
    %p97 = por %p95, %p96
    %p98 = scmp.ne.s32.totalorder %s90, %s92
    %p99 = scmp.eq.s32.totalorder %s19, 1
    %p100 = por %p98, %p99
    %p101 = scmp.ne.s32.totalorder %s92, %s93
    %p102 = scmp.eq.s32.totalorder %s19, 0
    %p103 = por %p101, %p102
    %p104 = scmp.ne.s32.totalorder %s92, %s93
    %p105 = scmp.eq.s32.totalorder %s20, 1
    %p106 = por %p104, %p105
    %p108 = scmp.ne.s32.totalorder %s93, %s107
    %p109 = scmp.eq.s32.totalorder %s20, 0
    %p110 = por %p108, %p109
    %s112 = sadd.s32 %s111, 1
    %p115 = scmp.eq.s32.totalorder %s14, 1
    %p116 = scmp.ne.s32.totalorder %s111, %s113
    %p117 = scmp.eq.s32.totalorder %s14, 0
    %p118 = por %p116, %p117
    %p119 = scmp.ne.s32.totalorder %s111, %s113
    %p120 = scmp.eq.s32.totalorder %s19, 1
    %p121 = por %p119, %p120
    %p122 = scmp.ne.s32.totalorder %s113, %s114
    %p123 = scmp.eq.s32.totalorder %s19, 0
    %p124 = por %p122, %p123
    %p125 = scmp.ne.s32.totalorder %s113, %s114
    %p126 = scmp.eq.s32.totalorder %s20, 1
    %p127 = por %p125, %p126
    %p129 = scmp.ne.s32.totalorder %s114, %s128
    %p130 = scmp.eq.s32.totalorder %s20, 0
    %p131 = por %p129, %p130
    %s133 = sadd.s32 %s132, 1
    %p136 = scmp.eq.s32.totalorder %s14, 1
    %p137 = scmp.ne.s32.totalorder %s132, %s134
    %p138 = scmp.eq.s32.totalorder %s14, 0
    %p139 = por %p137, %p138
    %p140 = scmp.ne.s32.totalorder %s132, %s134
    %p141 = scmp.eq.s32.totalorder %s19, 1
    %p142 = por %p140, %p141
    %p143 = scmp.ne.s32.totalorder %s134, %s135
    %p144 = scmp.eq.s32.totalorder %s19, 0
    %p145 = por %p143, %p144
    %p146 = scmp.ne.s32.totalorder %s134, %s135
    %p147 = scmp.eq.s32.totalorder %s20, 1
    %p148 = por %p146, %p147
    %p150 = scmp.ne.s32.totalorder %s135, %s149
    %p151 = scmp.eq.s32.totalorder %s20, 0
    %p152 = por %p150, %p151
    %s154 = sadd.s32 %s153, 1
    %p157 = scmp.eq.s32.totalorder %s14, 1
    %p158 = scmp.ne.s32.totalorder %s153, %s155
    %p159 = scmp.eq.s32.totalorder %s14, 0
    %p160 = por %p158, %p159
    %p161 = scmp.ne.s32.totalorder %s153, %s155
    %p162 = scmp.eq.s32.totalorder %s19, 1
    %p163 = por %p161, %p162
    %p164 = scmp.ne.s32.totalorder %s155, %s156
    %p165 = scmp.eq.s32.totalorder %s19, 0
    %p166 = por %p164, %p165
    %p167 = scmp.ne.s32.totalorder %s155, %s156
    %p168 = scmp.eq.s32.totalorder %s20, 1
    %p169 = por %p167, %p168
    %p171 = scmp.ne.s32.totalorder %s156, %s170
    %p172 = scmp.eq.s32.totalorder %s20, 0
    %p173 = por %p171, %p172
    %s175 = sadd.s32 %s174, 1
    %p178 = scmp.eq.s32.totalorder %s14, 1
    %p179 = scmp.ne.s32.totalorder %s174, %s176
    %p180 = scmp.eq.s32.totalorder %s14, 0
    %p181 = por %p179, %p180
    %p182 = scmp.ne.s32.totalorder %s174, %s176
    %p183 = scmp.eq.s32.totalorder %s19, 1
    %p184 = por %p182, %p183
    %p185 = scmp.ne.s32.totalorder %s176, %s177
    %p186 = scmp.eq.s32.totalorder %s19, 0
    %p187 = por %p185, %p186
    %p188 = scmp.ne.s32.totalorder %s176, %s177
    %p189 = scmp.eq.s32.totalorder %s20, 1
    %p190 = por %p188, %p189
    %p192 = scmp.ne.s32.totalorder %s177, %s191
    %p193 = scmp.eq.s32.totalorder %s20, 0
    %p194 = por %p192, %p193
    %s195 = ssub.s32 %s14, %s21
    %p196 = scmp.eq.s32.totalorder %s195, 0
    %s198 = sadd.s32 %s197, 1
    %s199 = scalar_select %p196, %s197, %s198
    %p202 = pneg %p196
    %p203 = scmp.eq.s32.totalorder %s14, 1
    %p204 = por %p202, %p203
    %p205 = scmp.ne.s32.totalorder %s197, %s200
    %p206 = scmp.eq.s32.totalorder %s14, 0
    %p207 = por %p205, %p206
    %p208 = scmp.ne.s32.totalorder %s197, %s200
    %p209 = scmp.eq.s32.totalorder %s19, 1
    %p210 = por %p208, %p209
    %p211 = scmp.ne.s32.totalorder %s200, %s201
    %p212 = scmp.eq.s32.totalorder %s19, 0
    %p213 = por %p211, %p212
    %p214 = scmp.ne.s32.totalorder %s200, %s201
    %p215 = scmp.eq.s32.totalorder %s20, 1
    %p216 = por %p214, %p215
    %p218 = scmp.ne.s32.totalorder %s201, %s217
    %p219 = scmp.eq.s32.totalorder %s20, 0
    %p220 = por %p218, %p219
    %p221 = scmp.le.s32.totalorder 1, %s14
    %p222 = scmp.lt.s32.totalorder %s14, 3
    %p223 = pnand %p221, %p222
    %p224 = pneg %p223
    // Predicated region
    $region9: #{resblock_forward.1} parent=5 // pred_check
      _
    $region10: #{resblock_forward.1} parent=5 // pred_check_branch
      %226 = sbr.rel (%p223) target = $region12
    $region11: #{resblock_forward.1} parent=5 // pred_region
      %s227 = ssub.s32 %s14, 1
      // Predicated region
      $region13: #{resblock_forward.1} parent=11 // pred_check
        %p228 = pneg %p61
      $region14: #{resblock_forward.1} parent=11 // pred_check_branch
        %230 = sbr.rel (%p228) target = $region16
      $region15: #{resblock_forward.1} parent=11 // pred_region
        _
      $region16: #{resblock_forward.1} parent=11 // pred_fallthru
        _
      // Predicated region
      $region17: #{resblock_forward.1} parent=11 // pred_check
        %p231 = pneg %p82
      $region18: #{resblock_forward.1} parent=11 // pred_check_branch
        %233 = sbr.rel (%p231) target = $region20
      $region19: #{resblock_forward.1} parent=11 // pred_region
        _
      $region20: #{resblock_forward.1} parent=11 // pred_fallthru
        _
      // Predicated region
      $region21: #{resblock_forward.1} parent=11 // pred_check
        %p234 = pneg %p103
      $region22: #{resblock_forward.1} parent=11 // pred_check_branch
        %236 = sbr.rel (%p234) target = $region24
      $region23: #{resblock_forward.1} parent=11 // pred_region
        _
      $region24: #{resblock_forward.1} parent=11 // pred_fallthru
        _
      // Predicated region
      $region25: #{resblock_forward.1} parent=11 // pred_check
        %p237 = pneg %p124
      $region26: #{resblock_forward.1} parent=11 // pred_check_branch
        %239 = sbr.rel (%p237) target = $region28
      $region27: #{resblock_forward.1} parent=11 // pred_region
        _
      $region28: #{resblock_forward.1} parent=11 // pred_fallthru
        _
      // Predicated region
      $region29: #{resblock_forward.1} parent=11 // pred_check
        %p240 = pneg %p145
      $region30: #{resblock_forward.1} parent=11 // pred_check_branch
        %242 = sbr.rel (%p240) target = $region32
      $region31: #{resblock_forward.1} parent=11 // pred_region
        _
      $region32: #{resblock_forward.1} parent=11 // pred_fallthru
        _
      // Predicated region
      $region33: #{resblock_forward.1} parent=11 // pred_check
        %p243 = pneg %p166
      $region34: #{resblock_forward.1} parent=11 // pred_check_branch
        %245 = sbr.rel (%p243) target = $region36
      $region35: #{resblock_forward.1} parent=11 // pred_region
        _
      $region36: #{resblock_forward.1} parent=11 // pred_fallthru
        _
      // Predicated region
      $region37: #{resblock_forward.1} parent=11 // pred_check
        %p246 = pneg %p187
      $region38: #{resblock_forward.1} parent=11 // pred_check_branch
        %248 = sbr.rel (%p246) target = $region40
      $region39: #{resblock_forward.1} parent=11 // pred_region
        _
      $region40: #{resblock_forward.1} parent=11 // pred_fallthru
        _
    $region12: #{resblock_forward.1} parent=5 // pred_fallthru
      _
    %p249 = scmp.lt.s32.totalorder %s14, 2
    // Predicated region
    $region41: #{resblock_forward.1} parent=5 // pred_check
      %p250 = pneg %p249
    $region42: #{resblock_forward.1} parent=5 // pred_check_branch
      %252 = sbr.rel (%p250) target = $region44
    $region43: #{resblock_forward.1} parent=5 // pred_region
      // Predicated region
      $region45: #{resblock_forward.1} parent=43 // pred_check
        %p253 = pneg %p34
      $region46: #{resblock_forward.1} parent=43 // pred_check_branch
        %255 = sbr.rel (%p253) target = $region48
      $region47: #{resblock_forward.1} parent=43 // pred_region
        %s256 = smul.u32 2, %s14
        %p257 = scmp.lt.s32.totalorder %s256, 3
        %s258 = scalar_select %p257, %s256, 3
        %s259 = smul.addr %s258, 4
        %s260 = scalar_lea.vmem %s0, %s259
        %s261 = smul.u32 2, %s14
      $region48: #{resblock_forward.1} parent=43 // pred_fallthru
        _
    $region44: #{resblock_forward.1} parent=5 // pred_fallthru
      _
    %p262 = scmp.le.s32.totalorder 1, %s14
    %p263 = scmp.lt.s32.totalorder %s14, 3
    %p264 = pnand %p262, %p263
    %p265 = pneg %p264
    // Predicated region
    $region49: #{resblock_forward.1} parent=5 // pred_check
      _
    $region50: #{resblock_forward.1} parent=5 // pred_check_branch
      %267 = sbr.rel (%p264) target = $region52
    $region51: #{resblock_forward.1} parent=5 // pred_region
      %s268 = ssub.s32 %s14, 1
      %s269 = smul.u32 2, %s19
      %p270 = scmp.lt.s32.totalorder %s269, 3
      %s271 = scalar_select %p270, %s269, 3
      %s272 = smul.addr %s271, 4
      %s273 = scalar_lea.vmem %s0, %s272
      %p274 = pneg %p40
      %p275 = pneg %p37
      %p276 = pneg %p61
      %p277 = pneg %p58
      %p278 = pneg %p82
      %p279 = pneg %p79
      %p280 = pneg %p103
      %p281 = pneg %p100
      %p282 = pneg %p124
      %p283 = pneg %p121
      %p284 = pneg %p145
      %p285 = pneg %p142
      %p286 = pneg %p166
      %p287 = pneg %p163
      %p288 = pneg %p187
      %p289 = pneg %p184
      %p290 = pneg %p213
      %p291 = pneg %p210
      %s292 = smul.u32 2, %s19
      %p293 = scmp.lt.s32.totalorder %s292, 3
      %s294 = scalar_select %p293, %s292, 3
      %s295 = smul.addr %s294, 4
      %s296 = scalar_lea.vmem %s8, %s295
      %s297 = smul.u32 2, %s19
      %p298 = scmp.lt.s32.totalorder %s297, 3
      %s299 = scalar_select %p298, %s297, 3
      %s300 = smul.addr %s299, 4
      %s301 = scalar_lea.vmem %s0, %s300
      %s302 = smul.u32 2, %s19
      %s303 = smul.u32 2, %s19
      %p304 = scmp.lt.s32.totalorder %s303, 3
      %s305 = scalar_select %p304, %s303, 3
      %s306 = smul.addr %s305, 4
      %s307 = scalar_lea.vmem %s8, %s306
      %s308 = smul.u32 2, %s19
      %v309 = vld [vmem:[%s1] sm:$0xff]
      %v310 = vld [vmem:[%s1 + $0x8] sm:$0xff]
      %v311 = vld [vmem:[%s301] sm:$0xff]
      %v312 = vld [vmem:[%s2] sm:$0xf]
      %v313 = vld [vmem:[%s3] sm:$0xf]
      %v315 = vcombine.high %v311, %v311
      %vm317 = vcmask 1043456
      %v318 = vsel %vm317, %v311, 0.0
      %v319 = vsel %vm317, %v315, 0.0
      %v320 = vadd.f32 %v318, %v319
      %321 = vadd.xlane.f32.xlu0 %v320
      %v322 = vpop.xlane.xlu0 %321
      %v323 = vrcp.pop 256.0
      %v324 = vmul.f32 %v322, %v323
      %v325 = vmul.f32 %v311, %v311
      %v327 = vcombine.high %v325, %v325
      %v329 = vsel %vm317, %v325, 0.0
      %v330 = vsel %vm317, %v327, 0.0
      %v331 = vadd.f32 %v329, %v330
      %332 = vadd.xlane.f32.xlu0 %v331
      %v333 = vpop.xlane.xlu0 %332
      %v334 = vmul.f32 %v333, %v323
      %v335 = vmul.f32 %v324, %v324
      %v336 = vsub.f32 %v334, %v335
      %v337 = vmax.f32 %v336, 0.0
      %v338 = vadd.f32 %v337, 1e-05
      %v339 = vrsqrt.pop %v338
      %v340 = vmul.f32 %v339, %v312
      %v341 = vmul.f32 %v324, %v340
      %v342 = vsub.f32 %v313, %v341
      %344 = vset.pattern.permute.xlu0 0
      %345 = vperm.xlu0 %344, %v340
      %v346 = vpop.permute.xlu0 %345
      %v348 = vunpack.c.l.s4 839922192
      %v349 = vunpack.c.0.s8 %v348
      %v350 = vlaneseq
      %v351 = vshrl.u32 %v350, 7
      %v352 = vsub.s32 %v349, %v351
      %v353 = vrot.slane %v346, %v352
      %v355 = vmul.f32 %v311, %v353
      %357 = vset.pattern.permute.xlu0 0
      %358 = vperm.xlu0 %357, %v342
      %v359 = vpop.permute.xlu0 %358
      %v361 = vunpack.c.l.s4 839922192
      %v362 = vunpack.c.0.s8 %v361
      %v363 = vlaneseq
      %v364 = vshrl.u32 %v363, 7
      %v365 = vsub.s32 %v362, %v364
      %v366 = vrot.slane %v359, %v365
      %v368 = vadd.f32 %v355, %v366
      %v369 = vmax.f32 %v368, 0.0
      %v371 = vcombine.high %v369, %v369
      %373 = vrot.lane.b32.xlu0 %v369, 17
      %v374 = vpop.permute.xlu0 %373
      %375 = vrot.lane.b32.xlu0 %v371, 17
      %v376 = vpop.permute.xlu0 %375
      %v377 = vlaneseq
      %v378 = vand.u32 %v377, 127
      %vm379 = vcmp.lt.s32.totalorder %v378, 17
      %v380 = vsel %vm379, %v374, %v376
      %v381 = vsel %vm379, %v376, %v374
      %v382 = vlaneseq
      %v383 = vshrl.u32 %v382, 7
      %v384 = vsub.s32 0, %v383
      %v385 = vrot.slane %v309, %v384
      %v386 = vlaneseq
      %v387 = vshrl.u32 %v386, 7
      %v388 = vsub.s32 0, %v387
      %v389 = vrot.slane %v310, %v388
      %v390 = vmul.f32 %v381, %v385
      %v391 = vmul.f32 %v380, %v389
      %v392 = vld [vmem:[%s4] sm:$0xf]
      %393 = vrot.lane.b32.xlu0 %v369, 16
      %v394 = vpop.permute.xlu0 %393
      %395 = vrot.lane.b32.xlu0 %v371, 16
      %v396 = vpop.permute.xlu0 %395
      %vm397 = vcmp.lt.s32.totalorder %v378, 16
      %v398 = vsel %vm397, %v394, %v396
      %v399 = vsel %vm397, %v396, %v394
      %v400 = vlaneseq
      %v401 = vshrl.u32 %v400, 7
      %v402 = vsub.s32 1, %v401
      %v403 = vrot.slane %v309, %v402
      %v404 = vlaneseq
      %v405 = vshrl.u32 %v404, 7
      %v406 = vsub.s32 1, %v405
      %v407 = vrot.slane %v310, %v406
      %v408 = vmul.f32 %v399, %v403
      %v409 = vmul.f32 %v398, %v407
      %s410 = scalar_lea.vmem %s4, 4
      %v411 = vld [vmem:[%s410] sm:$0xf]
      %vm412 = vcmask 31744
      %v414 = vsel %vm412, %v411, 0
      %v417 = vsel %vm317, %v408, 0
      %v420 = vsel %vm317, %v409, 0
      %422 = vmatprep.subr.mxu0 %v420
      %423 = vmatpush1.msra.mxu0 %v417
      %424 = vmatprep.subr.mxu0 0.0
      %425 = vmatpush1.msra.mxu0 0.0
      %426 = vmatprep.subr.mxu0 0.0
      %427 = vmatpush1.msra.mxu0 0.0
      %428 = vmatprep.subr.mxu0 0.0
      %429 = vmatpush1.msra.mxu0 0.0
      %430 = vmatprep.subr.mxu0 0.0
      %431 = vmatpush1.msra.mxu0 0.0
      %432 = vmatprep.subr.mxu0 0.0
      %433 = vmatpush1.msra.mxu0 0.0
      %434 = vmatprep.subr.mxu0 0.0
      %435 = vmatpush1.msra.mxu0 0.0
      %436 = vmatprep.subr.mxu0 0.0
      %437 = vmatpush1.msra.mxu0 0.0
      %438 = vmatprep.subr.mxu0 0.0
      %439 = vmatpush1.msra.mxu0 0.0
      %440 = vmatprep.subr.mxu0 0.0
      %441 = vmatpush1.msra.mxu0 0.0
      %442 = vmatprep.subr.mxu0 0.0
      %443 = vmatpush1.msra.mxu0 0.0
      %444 = vmatprep.subr.mxu0 0.0
      %445 = vmatpush1.msra.mxu0 0.0
      %446 = vmatprep.subr.mxu0 0.0
      %447 = vmatpush1.msra.mxu0 0.0
      %448 = vmatprep.subr.mxu0 0.0
      %449 = vmatpush1.msra.mxu0 0.0
      %450 = vmatprep.subr.mxu0 0.0
      %451 = vmatpush1.msra.mxu0 0.0
      %452 = vmatprep.subr.mxu0 0.0
      %453 = vmatpush1.msra.mxu0 0.0
      %454 = vmatprep.subr.mxu0 0.0
      %455 = vmatpush1.msra.mxu0 0.0
      %456 = vmatprep.subr.mxu0 0.0
      %457 = vmatpush1.msra.mxu0 0.0
      %458 = vmatprep.subr.mxu0 0.0
      %459 = vmatpush1.msra.mxu0 0.0
      %460 = vmatprep.subr.mxu0 0.0
      %461 = vmatpush1.msra.mxu0 0.0
      %462 = vmatprep.subr.mxu0 0.0
      %463 = vmatpush1.msra.mxu0 0.0
      %464 = vmatprep.subr.mxu0 0.0
      %465 = vmatpush1.msra.mxu0 0.0
      %466 = vmatprep.subr.mxu0 0.0
      %467 = vmatpush1.msra.mxu0 0.0
      %468 = vmatprep.subr.mxu0 0.0
      %469 = vmatpush1.msra.mxu0 0.0
      %470 = vmatprep.subr.mxu0 0.0
      %471 = vmatpush1.msra.mxu0 0.0
      %472 = vmatprep.subr.mxu0 0.0
      %473 = vmatpush1.msra.mxu0 0.0
      %474 = vmatprep.subr.mxu0 0.0
      %475 = vmatpush1.msra.mxu0 0.0
      %476 = vmatprep.subr.mxu0 0.0
      %477 = vmatpush1.msra.mxu0 0.0
      %478 = vmatprep.subr.mxu0 0.0
      %479 = vmatpush1.msra.mxu0 0.0
      %480 = vmatprep.subr.mxu0 0.0
      %481 = vmatpush1.msra.mxu0 0.0
      %482 = vmatprep.subr.mxu0 0.0
      %483 = vmatpush1.msra.mxu0 0.0
      %484 = vmatprep.subr.mxu0 0.0
      %485 = vmatpush1.msra.mxu0 0.0
      %486 = vmatprep.mubr.f32.mxu0 0.0
      %487 = vmatmul.mubr.f32.gmra.mrb[0].mxu0 %v414
      %v488 = vpop.f32.mrb[0].mxu0
      %v489 = vadd.f32 0.0, %v488
      %v490 = vpop.f32.mrb[0].mxu0
      %v491 = vadd.f32 0.0, %v490
      %492 = vdwg.mxu0
      %v494 = vsel %vm412, %v392, 0
      %v497 = vsel %vm317, %v390, 0
      %v500 = vsel %vm317, %v391, 0
      %502 = vmatprep.subr.mxu0 %v500
      %503 = vmatpush1.msra.mxu0 %v497
      %504 = vmatprep.subr.mxu0 0.0
      %505 = vmatpush1.msra.mxu0 0.0
      %506 = vmatprep.subr.mxu0 0.0
      %507 = vmatpush1.msra.mxu0 0.0
      %508 = vmatprep.subr.mxu0 0.0
      %509 = vmatpush1.msra.mxu0 0.0
      %510 = vmatprep.subr.mxu0 0.0
      %511 = vmatpush1.msra.mxu0 0.0
      %512 = vmatprep.subr.mxu0 0.0
      %513 = vmatpush1.msra.mxu0 0.0
      %514 = vmatprep.subr.mxu0 0.0
      %515 = vmatpush1.msra.mxu0 0.0
      %516 = vmatprep.subr.mxu0 0.0
      %517 = vmatpush1.msra.mxu0 0.0
      %518 = vmatprep.subr.mxu0 0.0
      %519 = vmatpush1.msra.mxu0 0.0
      %520 = vmatprep.subr.mxu0 0.0
      %521 = vmatpush1.msra.mxu0 0.0
      %522 = vmatprep.subr.mxu0 0.0
      %523 = vmatpush1.msra.mxu0 0.0
      %524 = vmatprep.subr.mxu0 0.0
      %525 = vmatpush1.msra.mxu0 0.0
      %526 = vmatprep.subr.mxu0 0.0
      %527 = vmatpush1.msra.mxu0 0.0
      %528 = vmatprep.subr.mxu0 0.0
      %529 = vmatpush1.msra.mxu0 0.0
      %530 = vmatprep.subr.mxu0 0.0
      %531 = vmatpush1.msra.mxu0 0.0
      %532 = vmatprep.subr.mxu0 0.0
      %533 = vmatpush1.msra.mxu0 0.0
      %534 = vmatprep.subr.mxu0 0.0
      %535 = vmatpush1.msra.mxu0 0.0
      %536 = vmatprep.subr.mxu0 0.0
      %537 = vmatpush1.msra.mxu0 0.0
      %538 = vmatprep.subr.mxu0 0.0
      %539 = vmatpush1.msra.mxu0 0.0
      %540 = vmatprep.subr.mxu0 0.0
      %541 = vmatpush1.msra.mxu0 0.0
      %542 = vmatprep.subr.mxu0 0.0
      %543 = vmatpush1.msra.mxu0 0.0
      %544 = vmatprep.subr.mxu0 0.0
      %545 = vmatpush1.msra.mxu0 0.0
      %546 = vmatprep.subr.mxu0 0.0
      %547 = vmatpush1.msra.mxu0 0.0
      %548 = vmatprep.subr.mxu0 0.0
      %549 = vmatpush1.msra.mxu0 0.0
      %550 = vmatprep.subr.mxu0 0.0
      %551 = vmatpush1.msra.mxu0 0.0
      %552 = vmatprep.subr.mxu0 0.0
      %553 = vmatpush1.msra.mxu0 0.0
      %554 = vmatprep.subr.mxu0 0.0
      %555 = vmatpush1.msra.mxu0 0.0
      %556 = vmatprep.subr.mxu0 0.0
      %557 = vmatpush1.msra.mxu0 0.0
      %558 = vmatprep.subr.mxu0 0.0
      %559 = vmatpush1.msra.mxu0 0.0
      %560 = vmatprep.subr.mxu0 0.0
      %561 = vmatpush1.msra.mxu0 0.0
      %562 = vmatprep.subr.mxu0 0.0
      %563 = vmatpush1.msra.mxu0 0.0
      %564 = vmatprep.subr.mxu0 0.0
      %565 = vmatpush1.msra.mxu0 0.0
      %566 = vmatprep.mubr.f32.mxu0 0.0
      %567 = vmatmul.mubr.f32.gmra.mrb[0].mxu0 %v494
      %v568 = vpop.f32.mrb[0].mxu0
      %v569 = vadd.f32 %v489, %v568
      %v570 = vpop.f32.mrb[0].mxu0
      %v571 = vadd.f32 %v491, %v570
      %572 = vdwg.mxu0
      %573 = vrot.lane.b32.xlu0 %v369, 15
      %v574 = vpop.permute.xlu0 %573
      %575 = vrot.lane.b32.xlu0 %v371, 15
      %v576 = vpop.permute.xlu0 %575
      %vm577 = vcmp.lt.s32.totalorder %v378, 15
      %v578 = vsel %vm577, %v574, %v576
      %v579 = vsel %vm577, %v576, %v574
      %v580 = vlaneseq
      %v581 = vshrl.u32 %v580, 7
      %v582 = vsub.s32 2, %v581
      %v583 = vrot.slane %v309, %v582
      %v584 = vlaneseq
      %v585 = vshrl.u32 %v584, 7
      %v586 = vsub.s32 2, %v585
      %v587 = vrot.slane %v310, %v586
      %v588 = vmul.f32 %v579, %v583
      %v589 = vmul.f32 %v578, %v587
      %s590 = scalar_lea.vmem %s4, 8
      %v591 = vld [vmem:[%s590] sm:$0xf]
      %v593 = vsel %vm412, %v591, 0
      %v596 = vsel %vm317, %v588, 0
      %v599 = vsel %vm317, %v589, 0
      %601 = vmatprep.subr.mxu0 %v599
      %602 = vmatpush1.msra.mxu0 %v596
      %603 = vmatprep.subr.mxu0 0.0
      %604 = vmatpush1.msra.mxu0 0.0
      %605 = vmatprep.subr.mxu0 0.0
      %606 = vmatpush1.msra.mxu0 0.0
      %607 = vmatprep.subr.mxu0 0.0
      %608 = vmatpush1.msra.mxu0 0.0
      %609 = vmatprep.subr.mxu0 0.0
      %610 = vmatpush1.msra.mxu0 0.0
      %611 = vmatprep.subr.mxu0 0.0
      %612 = vmatpush1.msra.mxu0 0.0
      %613 = vmatprep.subr.mxu0 0.0
      %614 = vmatpush1.msra.mxu0 0.0
      %615 = vmatprep.subr.mxu0 0.0
      %616 = vmatpush1.msra.mxu0 0.0
      %617 = vmatprep.subr.mxu0 0.0
      %618 = vmatpush1.msra.mxu0 0.0
      %619 = vmatprep.subr.mxu0 0.0
      %620 = vmatpush1.msra.mxu0 0.0
      %621 = vmatprep.subr.mxu0 0.0
      %622 = vmatpush1.msra.mxu0 0.0
      %623 = vmatprep.subr.mxu0 0.0
      %624 = vmatpush1.msra.mxu0 0.0
      %625 = vmatprep.subr.mxu0 0.0
      %626 = vmatpush1.msra.mxu0 0.0
      %627 = vmatprep.subr.mxu0 0.0
      %628 = vmatpush1.msra.mxu0 0.0
      %629 = vmatprep.subr.mxu0 0.0
      %630 = vmatpush1.msra.mxu0 0.0
      %631 = vmatprep.subr.mxu0 0.0
      %632 = vmatpush1.msra.mxu0 0.0
      %633 = vmatprep.subr.mxu0 0.0
      %634 = vmatpush1.msra.mxu0 0.0
      %635 = vmatprep.subr.mxu0 0.0
      %636 = vmatpush1.msra.mxu0 0.0
      %637 = vmatprep.subr.mxu0 0.0
      %638 = vmatpush1.msra.mxu0 0.0
      %639 = vmatprep.subr.mxu0 0.0
      %640 = vmatpush1.msra.mxu0 0.0
      %641 = vmatprep.subr.mxu0 0.0
      %642 = vmatpush1.msra.mxu0 0.0
      %643 = vmatprep.subr.mxu0 0.0
      %644 = vmatpush1.msra.mxu0 0.0
      %645 = vmatprep.subr.mxu0 0.0
      %646 = vmatpush1.msra.mxu0 0.0
      %647 = vmatprep.subr.mxu0 0.0
      %648 = vmatpush1.msra.mxu0 0.0
      %649 = vmatprep.subr.mxu0 0.0
      %650 = vmatpush1.msra.mxu0 0.0
      %651 = vmatprep.subr.mxu0 0.0
      %652 = vmatpush1.msra.mxu0 0.0
      %653 = vmatprep.subr.mxu0 0.0
      %654 = vmatpush1.msra.mxu0 0.0
      %655 = vmatprep.subr.mxu0 0.0
      %656 = vmatpush1.msra.mxu0 0.0
      %657 = vmatprep.subr.mxu0 0.0
      %658 = vmatpush1.msra.mxu0 0.0
      %659 = vmatprep.subr.mxu0 0.0
      %660 = vmatpush1.msra.mxu0 0.0
      %661 = vmatprep.subr.mxu0 0.0
      %662 = vmatpush1.msra.mxu0 0.0
      %663 = vmatprep.subr.mxu0 0.0
      %664 = vmatpush1.msra.mxu0 0.0
      %665 = vmatprep.mubr.f32.mxu0 0.0
      %666 = vmatmul.mubr.f32.gmra.mrb[0].mxu0 %v593
      %v667 = vpop.f32.mrb[0].mxu0
      %v668 = vadd.f32 0.0, %v667
      %v669 = vpop.f32.mrb[0].mxu0
      %v670 = vadd.f32 0.0, %v669
      %671 = vdwg.mxu0
      %v672 = vadd.f32 %v569, %v668
      %v673 = vadd.f32 %v571, %v670
      %674 = vrot.lane.b32.xlu0 %v369, 1
      %v675 = vpop.permute.xlu0 %674
      %676 = vrot.lane.b32.xlu0 %v371, 1
      %v677 = vpop.permute.xlu0 %676
      %vm678 = vcmp.lt.s32.totalorder %v378, 1
      %v679 = vsel %vm678, %v675, %v677
      %v680 = vsel %vm678, %v677, %v675
      %v681 = vlaneseq
      %v682 = vshrl.u32 %v681, 7
      %v683 = vsub.s32 3, %v682
      %v684 = vrot.slane %v309, %v683
      %v685 = vlaneseq
      %v686 = vshrl.u32 %v685, 7
      %v687 = vsub.s32 3, %v686
      %v688 = vrot.slane %v310, %v687
      %v689 = vmul.f32 %v680, %v684
      %v690 = vmul.f32 %v679, %v688
      %s691 = scalar_lea.vmem %s4, 12
      %v692 = vld [vmem:[%s691] sm:$0xf]
      %v694 = vsel %vm412, %v692, 0
      %v697 = vsel %vm317, %v689, 0
      %v700 = vsel %vm317, %v690, 0
      %702 = vmatprep.subr.mxu0 %v700
      %703 = vmatpush1.msra.mxu0 %v697
      %704 = vmatprep.subr.mxu0 0.0
      %705 = vmatpush1.msra.mxu0 0.0
      %706 = vmatprep.subr.mxu0 0.0
      %707 = vmatpush1.msra.mxu0 0.0
      %708 = vmatprep.subr.mxu0 0.0
      %709 = vmatpush1.msra.mxu0 0.0
      %710 = vmatprep.subr.mxu0 0.0
      %711 = vmatpush1.msra.mxu0 0.0
      %712 = vmatprep.subr.mxu0 0.0
      %713 = vmatpush1.msra.mxu0 0.0
      %714 = vmatprep.subr.mxu0 0.0
      %715 = vmatpush1.msra.mxu0 0.0
      %716 = vmatprep.subr.mxu0 0.0
      %717 = vmatpush1.msra.mxu0 0.0
      %718 = vmatprep.subr.mxu0 0.0
      %719 = vmatpush1.msra.mxu0 0.0
      %720 = vmatprep.subr.mxu0 0.0
      %721 = vmatpush1.msra.mxu0 0.0
      %722 = vmatprep.subr.mxu0 0.0
      %723 = vmatpush1.msra.mxu0 0.0
      %724 = vmatprep.subr.mxu0 0.0
      %725 = vmatpush1.msra.mxu0 0.0
      %726 = vmatprep.subr.mxu0 0.0
      %727 = vmatpush1.msra.mxu0 0.0
      %728 = vmatprep.subr.mxu0 0.0
      %729 = vmatpush1.msra.mxu0 0.0
      %730 = vmatprep.subr.mxu0 0.0
      %731 = vmatpush1.msra.mxu0 0.0
      %732 = vmatprep.subr.mxu0 0.0
      %733 = vmatpush1.msra.mxu0 0.0
      %734 = vmatprep.subr.mxu0 0.0
      %735 = vmatpush1.msra.mxu0 0.0
      %736 = vmatprep.subr.mxu0 0.0
      %737 = vmatpush1.msra.mxu0 0.0
      %738 = vmatprep.subr.mxu0 0.0
      %739 = vmatpush1.msra.mxu0 0.0
      %740 = vmatprep.subr.mxu0 0.0
      %741 = vmatpush1.msra.mxu0 0.0
      %742 = vmatprep.subr.mxu0 0.0
      %743 = vmatpush1.msra.mxu0 0.0
      %744 = vmatprep.subr.mxu0 0.0
      %745 = vmatpush1.msra.mxu0 0.0
      %746 = vmatprep.subr.mxu0 0.0
      %747 = vmatpush1.msra.mxu0 0.0
      %748 = vmatprep.subr.mxu0 0.0
      %749 = vmatpush1.msra.mxu0 0.0
      %750 = vmatprep.subr.mxu0 0.0
      %751 = vmatpush1.msra.mxu0 0.0
      %752 = vmatprep.subr.mxu0 0.0
      %753 = vmatpush1.msra.mxu0 0.0
      %754 = vmatprep.subr.mxu0 0.0
      %755 = vmatpush1.msra.mxu0 0.0
      %756 = vmatprep.subr.mxu0 0.0
      %757 = vmatpush1.msra.mxu0 0.0
      %758 = vmatprep.subr.mxu0 0.0
      %759 = vmatpush1.msra.mxu0 0.0
      %760 = vmatprep.subr.mxu0 0.0
      %761 = vmatpush1.msra.mxu0 0.0
      %762 = vmatprep.subr.mxu0 0.0
      %763 = vmatpush1.msra.mxu0 0.0
      %764 = vmatprep.subr.mxu0 0.0
      %765 = vmatpush1.msra.mxu0 0.0
      %766 = vmatprep.mubr.f32.mxu0 0.0
      %767 = vmatmul.mubr.f32.gmra.mrb[0].mxu0 %v694
      %v768 = vpop.f32.mrb[0].mxu0
      %v769 = vadd.f32 0.0, %v768
      %v770 = vpop.f32.mrb[0].mxu0
      %v771 = vadd.f32 0.0, %v770
      %772 = vdwg.mxu0
      %v773 = vadd.f32 %v672, %v769
      %v774 = vadd.f32 %v673, %v771
      %s775 = scalar_lea.vmem %s4, 16
      %v776 = vld [vmem:[%s775] sm:$0xf]
      %v778 = vsel %vm412, %v776, 0
      %v780 = vsel %vm317, %v369, 0
      %v782 = vsel %vm317, %v371, 0
      %784 = vmatprep.subr.mxu0 %v782
      %785 = vmatpush1.msra.mxu0 %v780
      %786 = vmatprep.subr.mxu0 0.0
      %787 = vmatpush1.msra.mxu0 0.0
      %788 = vmatprep.subr.mxu0 0.0
      %789 = vmatpush1.msra.mxu0 0.0
      %790 = vmatprep.subr.mxu0 0.0
      %791 = vmatpush1.msra.mxu0 0.0
      %792 = vmatprep.subr.mxu0 0.0
      %793 = vmatpush1.msra.mxu0 0.0
      %794 = vmatprep.subr.mxu0 0.0
      %795 = vmatpush1.msra.mxu0 0.0
      %796 = vmatprep.subr.mxu0 0.0
      %797 = vmatpush1.msra.mxu0 0.0
      %798 = vmatprep.subr.mxu0 0.0
      %799 = vmatpush1.msra.mxu0 0.0
      %800 = vmatprep.subr.mxu0 0.0
      %801 = vmatpush1.msra.mxu0 0.0
      %802 = vmatprep.subr.mxu0 0.0
      %803 = vmatpush1.msra.mxu0 0.0
      %804 = vmatprep.subr.mxu0 0.0
      %805 = vmatpush1.msra.mxu0 0.0
      %806 = vmatprep.subr.mxu0 0.0
      %807 = vmatpush1.msra.mxu0 0.0
      %808 = vmatprep.subr.mxu0 0.0
      %809 = vmatpush1.msra.mxu0 0.0
      %810 = vmatprep.subr.mxu0 0.0
      %811 = vmatpush1.msra.mxu0 0.0
      %812 = vmatprep.subr.mxu0 0.0
      %813 = vmatpush1.msra.mxu0 0.0
      %814 = vmatprep.subr.mxu0 0.0
      %815 = vmatpush1.msra.mxu0 0.0
      %816 = vmatprep.subr.mxu0 0.0
      %817 = vmatpush1.msra.mxu0 0.0
      %818 = vmatprep.subr.mxu0 0.0
      %819 = vmatpush1.msra.mxu0 0.0
      %820 = vmatprep.subr.mxu0 0.0
      %821 = vmatpush1.msra.mxu0 0.0
      %822 = vmatprep.subr.mxu0 0.0
      %823 = vmatpush1.msra.mxu0 0.0
      %824 = vmatprep.subr.mxu0 0.0
      %825 = vmatpush1.msra.mxu0 0.0
      %826 = vmatprep.subr.mxu0 0.0
      %827 = vmatpush1.msra.mxu0 0.0
      %828 = vmatprep.subr.mxu0 0.0
      %829 = vmatpush1.msra.mxu0 0.0
      %830 = vmatprep.subr.mxu0 0.0
      %831 = vmatpush1.msra.mxu0 0.0
      %832 = vmatprep.subr.mxu0 0.0
      %833 = vmatpush1.msra.mxu0 0.0
      %834 = vmatprep.subr.mxu0 0.0
      %835 = vmatpush1.msra.mxu0 0.0
      %836 = vmatprep.subr.mxu0 0.0
      %837 = vmatpush1.msra.mxu0 0.0
      %838 = vmatprep.subr.mxu0 0.0
      %839 = vmatpush1.msra.mxu0 0.0
      %840 = vmatprep.subr.mxu0 0.0
      %841 = vmatpush1.msra.mxu0 0.0
      %842 = vmatprep.subr.mxu0 0.0
      %843 = vmatpush1.msra.mxu0 0.0
      %844 = vmatprep.subr.mxu0 0.0
      %845 = vmatpush1.msra.mxu0 0.0
      %846 = vmatprep.subr.mxu0 0.0
      %847 = vmatpush1.msra.mxu0 0.0
      %848 = vmatprep.mubr.f32.mxu0 0.0
      %849 = vmatmul.mubr.f32.gmra.mrb[0].mxu0 %v778
      %v850 = vpop.f32.mrb[0].mxu0
      %v851 = vadd.f32 0.0, %v850
      %v852 = vpop.f32.mrb[0].mxu0
      %v853 = vadd.f32 0.0, %v852
      %854 = vdwg.mxu0
      %v855 = vadd.f32 %v773, %v851
      %v856 = vadd.f32 %v774, %v853
      %857 = vrot.lane.b32.xlu0 %v369, 127
      %v858 = vpop.permute.xlu0 %857
      %859 = vrot.lane.b32.xlu0 %v371, 127
      %v860 = vpop.permute.xlu0 %859
      %vm861 = vcmp.lt.s32.totalorder %v378, 127
      %v862 = vsel %vm861, %v858, %v860
      %v863 = vsel %vm861, %v860, %v858
      %v864 = vlaneseq
      %v865 = vshrl.u32 %v864, 7
      %v866 = vsub.s32 4, %v865
      %v867 = vrot.slane %v309, %v866
      %v868 = vlaneseq
      %v869 = vshrl.u32 %v868, 7
      %v870 = vsub.s32 4, %v869
      %v871 = vrot.slane %v310, %v870
      %v872 = vmul.f32 %v862, %v867
      %v873 = vmul.f32 %v863, %v871
      %s874 = scalar_lea.vmem %s4, 20
      %v875 = vld [vmem:[%s874] sm:$0xf]
      %v877 = vsel %vm412, %v875, 0
      %v880 = vsel %vm317, %v872, 0
      %v883 = vsel %vm317, %v873, 0
      %885 = vmatprep.subr.mxu0 %v883
      %886 = vmatpush1.msra.mxu0 %v880
      %887 = vmatprep.subr.mxu0 0.0
      %888 = vmatpush1.msra.mxu0 0.0
      %889 = vmatprep.subr.mxu0 0.0
      %890 = vmatpush1.msra.mxu0 0.0
      %891 = vmatprep.subr.mxu0 0.0
      %892 = vmatpush1.msra.mxu0 0.0
      %893 = vmatprep.subr.mxu0 0.0
      %894 = vmatpush1.msra.mxu0 0.0
      %895 = vmatprep.subr.mxu0 0.0
      %896 = vmatpush1.msra.mxu0 0.0
      %897 = vmatprep.subr.mxu0 0.0
      %898 = vmatpush1.msra.mxu0 0.0
      %899 = vmatprep.subr.mxu0 0.0
      %900 = vmatpush1.msra.mxu0 0.0
      %901 = vmatprep.subr.mxu0 0.0
      %902 = vmatpush1.msra.mxu0 0.0
      %903 = vmatprep.subr.mxu0 0.0
      %904 = vmatpush1.msra.mxu0 0.0
      %905 = vmatprep.subr.mxu0 0.0
      %906 = vmatpush1.msra.mxu0 0.0
      %907 = vmatprep.subr.mxu0 0.0
      %908 = vmatpush1.msra.mxu0 0.0
      %909 = vmatprep.subr.mxu0 0.0
      %910 = vmatpush1.msra.mxu0 0.0
      %911 = vmatprep.subr.mxu0 0.0
      %912 = vmatpush1.msra.mxu0 0.0
      %913 = vmatprep.subr.mxu0 0.0
      %914 = vmatpush1.msra.mxu0 0.0
      %915 = vmatprep.subr.mxu0 0.0
      %916 = vmatpush1.msra.mxu0 0.0
      %917 = vmatprep.subr.mxu0 0.0
      %918 = vmatpush1.msra.mxu0 0.0
      %919 = vmatprep.subr.mxu0 0.0
      %920 = vmatpush1.msra.mxu0 0.0
      %921 = vmatprep.subr.mxu0 0.0
      %922 = vmatpush1.msra.mxu0 0.0
      %923 = vmatprep.subr.mxu0 0.0
      %924 = vmatpush1.msra.mxu0 0.0
      %925 = vmatprep.subr.mxu0 0.0
      %926 = vmatpush1.msra.mxu0 0.0
      %927 = vmatprep.subr.mxu0 0.0
      %928 = vmatpush1.msra.mxu0 0.0
      %929 = vmatprep.subr.mxu0 0.0
      %930 = vmatpush1.msra.mxu0 0.0
      %931 = vmatprep.subr.mxu0 0.0
      %932 = vmatpush1.msra.mxu0 0.0
      %933 = vmatprep.subr.mxu0 0.0
      %934 = vmatpush1.msra.mxu0 0.0
      %935 = vmatprep.subr.mxu0 0.0
      %936 = vmatpush1.msra.mxu0 0.0
      %937 = vmatprep.subr.mxu0 0.0
      %938 = vmatpush1.msra.mxu0 0.0
      %939 = vmatprep.subr.mxu0 0.0
      %940 = vmatpush1.msra.mxu0 0.0
      %941 = vmatprep.subr.mxu0 0.0
      %942 = vmatpush1.msra.mxu0 0.0
      %943 = vmatprep.subr.mxu0 0.0
      %944 = vmatpush1.msra.mxu0 0.0
      %945 = vmatprep.subr.mxu0 0.0
      %946 = vmatpush1.msra.mxu0 0.0
      %947 = vmatprep.subr.mxu0 0.0
      %948 = vmatpush1.msra.mxu0 0.0
      %949 = vmatprep.mubr.f32.mxu0 0.0
      %950 = vmatmul.mubr.f32.gmra.mrb[0].mxu0 %v877
      %v951 = vpop.f32.mrb[0].mxu0
      %v952 = vadd.f32 0.0, %v951
      %v953 = vpop.f32.mrb[0].mxu0
      %v954 = vadd.f32 0.0, %v953
      %955 = vdwg.mxu0
      %v956 = vadd.f32 %v855, %v952
      %v957 = vadd.f32 %v856, %v954
      %958 = vrot.lane.b32.xlu0 %v369, 113
      %v959 = vpop.permute.xlu0 %958
      %960 = vrot.lane.b32.xlu0 %v371, 113
      %v961 = vpop.permute.xlu0 %960
      %vm962 = vcmp.lt.s32.totalorder %v378, 113
      %v963 = vsel %vm962, %v959, %v961
      %v964 = vsel %vm962, %v961, %v959
      %v965 = vlaneseq
      %v966 = vshrl.u32 %v965, 7
      %v967 = vsub.s32 5, %v966
      %v968 = vrot.slane %v309, %v967
      %v969 = vlaneseq
      %v970 = vshrl.u32 %v969, 7
      %v971 = vsub.s32 5, %v970
      %v972 = vrot.slane %v310, %v971
      %v973 = vmul.f32 %v963, %v968
      %v974 = vmul.f32 %v964, %v972
      %s975 = scalar_lea.vmem %s4, 24
      %v976 = vld [vmem:[%s975] sm:$0xf]
      %v978 = vsel %vm412, %v976, 0
      %v981 = vsel %vm317, %v973, 0
      %v984 = vsel %vm317, %v974, 0
      %986 = vmatprep.subr.mxu0 %v984
      %987 = vmatpush1.msra.mxu0 %v981
      %988 = vmatprep.subr.mxu0 0.0
      %989 = vmatpush1.msra.mxu0 0.0
      %990 = vmatprep.subr.mxu0 0.0
      %991 = vmatpush1.msra.mxu0 0.0
      %992 = vmatprep.subr.mxu0 0.0
      %993 = vmatpush1.msra.mxu0 0.0
      %994 = vmatprep.subr.mxu0 0.0
      %995 = vmatpush1.msra.mxu0 0.0
      %996 = vmatprep.subr.mxu0 0.0
      %997 = vmatpush1.msra.mxu0 0.0
      %998 = vmatprep.subr.mxu0 0.0
      %999 = vmatpush1.msra.mxu0 0.0
      %1000 = vmatprep.subr.mxu0 0.0
      %1001 = vmatpush1.msra.mxu0 0.0
      %1002 = vmatprep.subr.mxu0 0.0
      %1003 = vmatpush1.msra.mxu0 0.0
      %1004 = vmatprep.subr.mxu0 0.0
      %1005 = vmatpush1.msra.mxu0 0.0
      %1006 = vmatprep.subr.mxu0 0.0
      %1007 = vmatpush1.msra.mxu0 0.0
      %1008 = vmatprep.subr.mxu0 0.0
      %1009 = vmatpush1.msra.mxu0 0.0
      %1010 = vmatprep.subr.mxu0 0.0
      %1011 = vmatpush1.msra.mxu0 0.0
      %1012 = vmatprep.subr.mxu0 0.0
      %1013 = vmatpush1.msra.mxu0 0.0
      %1014 = vmatprep.subr.mxu0 0.0
      %1015 = vmatpush1.msra.mxu0 0.0
      %1016 = vmatprep.subr.mxu0 0.0
      %1017 = vmatpush1.msra.mxu0 0.0
      %1018 = vmatprep.subr.mxu0 0.0
      %1019 = vmatpush1.msra.mxu0 0.0
      %1020 = vmatprep.subr.mxu0 0.0
      %1021 = vmatpush1.msra.mxu0 0.0
      %1022 = vmatprep.subr.mxu0 0.0
      %1023 = vmatpush1.msra.mxu0 0.0
      %1024 = vmatprep.subr.mxu0 0.0
      %1025 = vmatpush1.msra.mxu0 0.0
      %1026 = vmatprep.subr.mxu0 0.0
      %1027 = vmatpush1.msra.mxu0 0.0
      %1028 = vmatprep.subr.mxu0 0.0
      %1029 = vmatpush1.msra.mxu0 0.0
      %1030 = vmatprep.subr.mxu0 0.0
      %1031 = vmatpush1.msra.mxu0 0.0
      %1032 = vmatprep.subr.mxu0 0.0
      %1033 = vmatpush1.msra.mxu0 0.0
      %1034 = vmatprep.subr.mxu0 0.0
      %1035 = vmatpush1.msra.mxu0 0.0
      %1036 = vmatprep.subr.mxu0 0.0
      %1037 = vmatpush1.msra.mxu0 0.0
      %1038 = vmatprep.subr.mxu0 0.0
      %1039 = vmatpush1.msra.mxu0 0.0
      %1040 = vmatprep.subr.mxu0 0.0
      %1041 = vmatpush1.msra.mxu0 0.0
      %1042 = vmatprep.subr.mxu0 0.0
      %1043 = vmatpush1.msra.mxu0 0.0
      %1044 = vmatprep.subr.mxu0 0.0
      %1045 = vmatpush1.msra.mxu0 0.0
      %1046 = vmatprep.subr.mxu0 0.0
      %1047 = vmatpush1.msra.mxu0 0.0
      %1048 = vmatprep.subr.mxu0 0.0
      %1049 = vmatpush1.msra.mxu0 0.0
      %1050 = vmatprep.mubr.f32.mxu0 0.0
      %1051 = vmatmul.mubr.f32.gmra.mrb[0].mxu0 %v978
      %v1052 = vpop.f32.mrb[0].mxu0
      %v1053 = vadd.f32 0.0, %v1052
      %v1054 = vpop.f32.mrb[0].mxu0
      %v1055 = vadd.f32 0.0, %v1054
      %1056 = vdwg.mxu0
      %v1057 = vadd.f32 %v956, %v1053
      %v1058 = vadd.f32 %v957, %v1055
      %1059 = vrot.lane.b32.xlu0 %v369, 112
      %v1060 = vpop.permute.xlu0 %1059
      %1061 = vrot.lane.b32.xlu0 %v371, 112
      %v1062 = vpop.permute.xlu0 %1061
      %vm1063 = vcmp.lt.s32.totalorder %v378, 112
      %v1064 = vsel %vm1063, %v1060, %v1062
      %v1065 = vsel %vm1063, %v1062, %v1060
      %v1066 = vlaneseq
      %v1067 = vshrl.u32 %v1066, 7
      %v1068 = vsub.s32 6, %v1067
      %v1069 = vrot.slane %v309, %v1068
      %v1070 = vlaneseq
      %v1071 = vshrl.u32 %v1070, 7
      %v1072 = vsub.s32 6, %v1071
      %v1073 = vrot.slane %v310, %v1072
      %v1074 = vmul.f32 %v1064, %v1069
      %v1075 = vmul.f32 %v1065, %v1073
      %s1076 = scalar_lea.vmem %s4, 28
      %v1077 = vld [vmem:[%s1076] sm:$0xf]
      %v1079 = vsel %vm412, %v1077, 0
      %v1082 = vsel %vm317, %v1074, 0
      %v1085 = vsel %vm317, %v1075, 0
      %1087 = vmatprep.subr.mxu0 %v1085
      %1088 = vmatpush1.msra.mxu0 %v1082
      %1089 = vmatprep.subr.mxu0 0.0
      %1090 = vmatpush1.msra.mxu0 0.0
      %1091 = vmatprep.subr.mxu0 0.0
      %1092 = vmatpush1.msra.mxu0 0.0
      %1093 = vmatprep.subr.mxu0 0.0
      %1094 = vmatpush1.msra.mxu0 0.0
      %1095 = vmatprep.subr.mxu0 0.0
      %1096 = vmatpush1.msra.mxu0 0.0
      %1097 = vmatprep.subr.mxu0 0.0
      %1098 = vmatpush1.msra.mxu0 0.0
      %1099 = vmatprep.subr.mxu0 0.0
      %1100 = vmatpush1.msra.mxu0 0.0
      %1101 = vmatprep.subr.mxu0 0.0
      %1102 = vmatpush1.msra.mxu0 0.0
      %1103 = vmatprep.subr.mxu0 0.0
      %1104 = vmatpush1.msra.mxu0 0.0
      %1105 = vmatprep.subr.mxu0 0.0
      %1106 = vmatpush1.msra.mxu0 0.0
      %1107 = vmatprep.subr.mxu0 0.0
      %1108 = vmatpush1.msra.mxu0 0.0
      %1109 = vmatprep.subr.mxu0 0.0
      %1110 = vmatpush1.msra.mxu0 0.0
      %1111 = vmatprep.subr.mxu0 0.0
      %1112 = vmatpush1.msra.mxu0 0.0
      %1113 = vmatprep.subr.mxu0 0.0
      %1114 = vmatpush1.msra.mxu0 0.0
      %1115 = vmatprep.subr.mxu0 0.0
      %1116 = vmatpush1.msra.mxu0 0.0
      %1117 = vmatprep.subr.mxu0 0.0
      %1118 = vmatpush1.msra.mxu0 0.0
      %1119 = vmatprep.subr.mxu0 0.0
      %1120 = vmatpush1.msra.mxu0 0.0
      %1121 = vmatprep.subr.mxu0 0.0
      %1122 = vmatpush1.msra.mxu0 0.0
      %1123 = vmatprep.subr.mxu0 0.0
      %1124 = vmatpush1.msra.mxu0 0.0
      %1125 = vmatprep.subr.mxu0 0.0
      %1126 = vmatpush1.msra.mxu0 0.0
      %1127 = vmatprep.subr.mxu0 0.0
      %1128 = vmatpush1.msra.mxu0 0.0
      %1129 = vmatprep.subr.mxu0 0.0
      %1130 = vmatpush1.msra.mxu0 0.0
      %1131 = vmatprep.subr.mxu0 0.0
      %1132 = vmatpush1.msra.mxu0 0.0
      %1133 = vmatprep.subr.mxu0 0.0
      %1134 = vmatpush1.msra.mxu0 0.0
      %1135 = vmatprep.subr.mxu0 0.0
      %1136 = vmatpush1.msra.mxu0 0.0
      %1137 = vmatprep.subr.mxu0 0.0
      %1138 = vmatpush1.msra.mxu0 0.0
      %1139 = vmatprep.subr.mxu0 0.0
      %1140 = vmatpush1.msra.mxu0 0.0
      %1141 = vmatprep.subr.mxu0 0.0
      %1142 = vmatpush1.msra.mxu0 0.0
      %1143 = vmatprep.subr.mxu0 0.0
      %1144 = vmatpush1.msra.mxu0 0.0
      %1145 = vmatprep.subr.mxu0 0.0
      %1146 = vmatpush1.msra.mxu0 0.0
      %1147 = vmatprep.subr.mxu0 0.0
      %1148 = vmatpush1.msra.mxu0 0.0
      %1149 = vmatprep.subr.mxu0 0.0
      %1150 = vmatpush1.msra.mxu0 0.0
      %1151 = vmatprep.mubr.f32.mxu0 0.0
      %1152 = vmatmul.mubr.f32.gmra.mrb[0].mxu0 %v1079
      %v1153 = vpop.f32.mrb[0].mxu0
      %v1154 = vadd.f32 0.0, %v1153
      %v1155 = vpop.f32.mrb[0].mxu0
      %v1156 = vadd.f32 0.0, %v1155
      %1157 = vdwg.mxu0
      %v1158 = vadd.f32 %v1057, %v1154
      %v1159 = vadd.f32 %v1058, %v1156
      %1160 = vrot.lane.b32.xlu0 %v369, 111
      %v1161 = vpop.permute.xlu0 %1160
      %1162 = vrot.lane.b32.xlu0 %v371, 111
      %v1163 = vpop.permute.xlu0 %1162
      %vm1164 = vcmp.lt.s32.totalorder %v378, 111
      %v1165 = vsel %vm1164, %v1161, %v1163
      %v1166 = vsel %vm1164, %v1163, %v1161
      %v1167 = vlaneseq
      %v1168 = vshrl.u32 %v1167, 7
      %v1169 = vsub.s32 7, %v1168
      %v1170 = vrot.slane %v309, %v1169
      %v1171 = vlaneseq
      %v1172 = vshrl.u32 %v1171, 7
      %v1173 = vsub.s32 7, %v1172
      %v1174 = vrot.slane %v310, %v1173
      %v1175 = vmul.f32 %v1165, %v1170
      %v1176 = vmul.f32 %v1166, %v1174
      %s1177 = scalar_lea.vmem %s4, 32
      %v1178 = vld [vmem:[%s1177] sm:$0xf]
      %v1180 = vsel %vm412, %v1178, 0
      %v1183 = vsel %vm317, %v1175, 0
      %v1186 = vsel %vm317, %v1176, 0
      %1188 = vmatprep.subr.mxu0 %v1186
      %1189 = vmatpush1.msra.mxu0 %v1183
      %1190 = vmatprep.subr.mxu0 0.0
      %1191 = vmatpush1.msra.mxu0 0.0
      %1192 = vmatprep.subr.mxu0 0.0
      %1193 = vmatpush1.msra.mxu0 0.0
      %1194 = vmatprep.subr.mxu0 0.0
      %1195 = vmatpush1.msra.mxu0 0.0
      %1196 = vmatprep.subr.mxu0 0.0
      %1197 = vmatpush1.msra.mxu0 0.0
      %1198 = vmatprep.subr.mxu0 0.0
      %1199 = vmatpush1.msra.mxu0 0.0
      %1200 = vmatprep.subr.mxu0 0.0
      %1201 = vmatpush1.msra.mxu0 0.0
      %1202 = vmatprep.subr.mxu0 0.0
      %1203 = vmatpush1.msra.mxu0 0.0
      %1204 = vmatprep.subr.mxu0 0.0
      %1205 = vmatpush1.msra.mxu0 0.0
      %1206 = vmatprep.subr.mxu0 0.0
      %1207 = vmatpush1.msra.mxu0 0.0
      %1208 = vmatprep.subr.mxu0 0.0
      %1209 = vmatpush1.msra.mxu0 0.0
      %1210 = vmatprep.subr.mxu0 0.0
      %1211 = vmatpush1.msra.mxu0 0.0
      %1212 = vmatprep.subr.mxu0 0.0
      %1213 = vmatpush1.msra.mxu0 0.0
      %1214 = vmatprep.subr.mxu0 0.0
      %1215 = vmatpush1.msra.mxu0 0.0
      %1216 = vmatprep.subr.mxu0 0.0
      %1217 = vmatpush1.msra.mxu0 0.0
      %1218 = vmatprep.subr.mxu0 0.0
      %1219 = vmatpush1.msra.mxu0 0.0
      %1220 = vmatprep.subr.mxu0 0.0
      %1221 = vmatpush1.msra.mxu0 0.0
      %1222 = vmatprep.subr.mxu0 0.0
      %1223 = vmatpush1.msra.mxu0 0.0
      %1224 = vmatprep.subr.mxu0 0.0
      %1225 = vmatpush1.msra.mxu0 0.0
      %1226 = vmatprep.subr.mxu0 0.0
      %1227 = vmatpush1.msra.mxu0 0.0
      %1228 = vmatprep.subr.mxu0 0.0
      %1229 = vmatpush1.msra.mxu0 0.0
      %1230 = vmatprep.subr.mxu0 0.0
      %1231 = vmatpush1.msra.mxu0 0.0
      %1232 = vmatprep.subr.mxu0 0.0
      %1233 = vmatpush1.msra.mxu0 0.0
      %1234 = vmatprep.subr.mxu0 0.0
      %1235 = vmatpush1.msra.mxu0 0.0
      %1236 = vmatprep.subr.mxu0 0.0
      %1237 = vmatpush1.msra.mxu0 0.0
      %1238 = vmatprep.subr.mxu0 0.0
      %1239 = vmatpush1.msra.mxu0 0.0
      %1240 = vmatprep.subr.mxu0 0.0
      %1241 = vmatpush1.msra.mxu0 0.0
      %1242 = vmatprep.subr.mxu0 0.0
      %1243 = vmatpush1.msra.mxu0 0.0
      %1244 = vmatprep.subr.mxu0 0.0
      %1245 = vmatpush1.msra.mxu0 0.0
      %1246 = vmatprep.subr.mxu0 0.0
      %1247 = vmatpush1.msra.mxu0 0.0
      %1248 = vmatprep.subr.mxu0 0.0
      %1249 = vmatpush1.msra.mxu0 0.0
      %1250 = vmatprep.subr.mxu0 0.0
      %1251 = vmatpush1.msra.mxu0 0.0
      %1252 = vmatprep.mubr.f32.mxu0 0.0
      %1253 = vmatmul.mubr.f32.gmra.mrb[0].mxu0 %v1180
      %v1254 = vpop.f32.mrb[0].mxu0
      %v1255 = vadd.f32 0.0, %v1254
      %v1256 = vpop.f32.mrb[0].mxu0
      %v1257 = vadd.f32 0.0, %v1256
      %1258 = vdwg.mxu0
      %v1259 = vadd.f32 %v1158, %v1255
      %v1260 = vadd.f32 %v1159, %v1257
      %v1261 = vld [vmem:[%s5] sm:$0xf]
      %v1262 = vld [vmem:[%s6] sm:$0xf]
      %v1263 = vsel %vm317, %v1259, 0.0
      %v1264 = vsel %vm317, %v1260, 0.0
      %v1265 = vadd.f32 %v1263, %v1264
      %1266 = vadd.xlane.f32.xlu0 %v1265
      %v1267 = vpop.xlane.xlu0 %1266
      %v1268 = vmul.f32 %v1267, %v323
      %v1269 = vmul.f32 %v1259, %v1259
      %v1270 = vmul.f32 %v1260, %v1260
      %v1271 = vsel %vm317, %v1269, 0.0
      %v1272 = vsel %vm317, %v1270, 0.0
      %v1273 = vadd.f32 %v1271, %v1272
      %1274 = vadd.xlane.f32.xlu0 %v1273
      %v1275 = vpop.xlane.xlu0 %1274
      %v1276 = vmul.f32 %v1275, %v323
      %v1277 = vmul.f32 %v1268, %v1268
      %v1278 = vsub.f32 %v1276, %v1277
      %v1279 = vmax.f32 %v1278, 0.0
      %v1280 = vadd.f32 %v1279, 1e-05
      %v1281 = vrsqrt.pop %v1280
      %v1282 = vmul.f32 %v1281, %v1261
      %v1283 = vmul.f32 %v1268, %v1282
      %v1284 = vsub.f32 %v1262, %v1283
      %1286 = vset.pattern.permute.xlu0 0
      %1287 = vperm.xlu0 %1286, %v1282
      %v1288 = vpop.permute.xlu0 %1287
      %v1290 = vmul.f32 %v1259, %v1288
      %v1291 = vmul.f32 %v1260, %v1288
      %1293 = vset.pattern.permute.xlu0 0
      %1294 = vperm.xlu0 %1293, %v1284
      %v1295 = vpop.permute.xlu0 %1294
      %v1297 = vadd.f32 %v1290, %v1295
      %v1298 = vadd.f32 %v1291, %v1295
      %v1299 = vmax.f32 %v1297, 0.0
      %v1300 = vmax.f32 %v1298, 0.0
      %1301 = vrot.lane.b32.xlu0 %v1299, 17
      %v1302 = vpop.permute.xlu0 %1301
      %1303 = vrot.lane.b32.xlu0 %v1300, 17
      %v1304 = vpop.permute.xlu0 %1303
      %v1305 = vsel %vm379, %v1302, %v1304
      %v1306 = vsel %vm379, %v1304, %v1302
      %v1307 = vmul.f32 %v1306, %v385
      %v1308 = vmul.f32 %v1305, %v389
      %v1309 = vld [vmem:[%s7] sm:$0xf]
      %1310 = vrot.lane.b32.xlu0 %v1299, 16
      %v1311 = vpop.permute.xlu0 %1310
      %1312 = vrot.lane.b32.xlu0 %v1300, 16
      %v1313 = vpop.permute.xlu0 %1312
      %v1314 = vsel %vm397, %v1311, %v1313
      %v1315 = vsel %vm397, %v1313, %v1311
      %v1316 = vmul.f32 %v1315, %v403
      %v1317 = vmul.f32 %v1314, %v407
      %s1318 = scalar_lea.vmem %s7, 4
      %v1319 = vld [vmem:[%s1318] sm:$0xf]
      %v1321 = vsel %vm412, %v1319, 0
      %v1324 = vsel %vm317, %v1316, 0
      %v1327 = vsel %vm317, %v1317, 0
      %1329 = vmatprep.subr.mxu0 %v1327
      %1330 = vmatpush1.msra.mxu0 %v1324
      %1331 = vmatprep.subr.mxu0 0.0
      %1332 = vmatpush1.msra.mxu0 0.0
      %1333 = vmatprep.subr.mxu0 0.0
      %1334 = vmatpush1.msra.mxu0 0.0
      %1335 = vmatprep.subr.mxu0 0.0
      %1336 = vmatpush1.msra.mxu0 0.0
      %1337 = vmatprep.subr.mxu0 0.0
      %1338 = vmatpush1.msra.mxu0 0.0
      %1339 = vmatprep.subr.mxu0 0.0
      %1340 = vmatpush1.msra.mxu0 0.0
      %1341 = vmatprep.subr.mxu0 0.0
      %1342 = vmatpush1.msra.mxu0 0.0
      %1343 = vmatprep.subr.mxu0 0.0
      %1344 = vmatpush1.msra.mxu0 0.0
      %1345 = vmatprep.subr.mxu0 0.0
      %1346 = vmatpush1.msra.mxu0 0.0
      %1347 = vmatprep.subr.mxu0 0.0
      %1348 = vmatpush1.msra.mxu0 0.0
      %1349 = vmatprep.subr.mxu0 0.0
      %1350 = vmatpush1.msra.mxu0 0.0
      %1351 = vmatprep.subr.mxu0 0.0
      %1352 = vmatpush1.msra.mxu0 0.0
      %1353 = vmatprep.subr.mxu0 0.0
      %1354 = vmatpush1.msra.mxu0 0.0
      %1355 = vmatprep.subr.mxu0 0.0
      %1356 = vmatpush1.msra.mxu0 0.0
      %1357 = vmatprep.subr.mxu0 0.0
      %1358 = vmatpush1.msra.mxu0 0.0
      %1359 = vmatprep.subr.mxu0 0.0
      %1360 = vmatpush1.msra.mxu0 0.0
      %1361 = vmatprep.subr.mxu0 0.0
      %1362 = vmatpush1.msra.mxu0 0.0
      %1363 = vmatprep.subr.mxu0 0.0
      %1364 = vmatpush1.msra.mxu0 0.0
      %1365 = vmatprep.subr.mxu0 0.0
      %1366 = vmatpush1.msra.mxu0 0.0
      %1367 = vmatprep.subr.mxu0 0.0
      %1368 = vmatpush1.msra.mxu0 0.0
      %1369 = vmatprep.subr.mxu0 0.0
      %1370 = vmatpush1.msra.mxu0 0.0
      %1371 = vmatprep.subr.mxu0 0.0
      %1372 = vmatpush1.msra.mxu0 0.0
      %1373 = vmatprep.subr.mxu0 0.0
      %1374 = vmatpush1.msra.mxu0 0.0
      %1375 = vmatprep.subr.mxu0 0.0
      %1376 = vmatpush1.msra.mxu0 0.0
      %1377 = vmatprep.subr.mxu0 0.0
      %1378 = vmatpush1.msra.mxu0 0.0
      %1379 = vmatprep.subr.mxu0 0.0
      %1380 = vmatpush1.msra.mxu0 0.0
      %1381 = vmatprep.subr.mxu0 0.0
      %1382 = vmatpush1.msra.mxu0 0.0
      %1383 = vmatprep.subr.mxu0 0.0
      %1384 = vmatpush1.msra.mxu0 0.0
      %1385 = vmatprep.subr.mxu0 0.0
      %1386 = vmatpush1.msra.mxu0 0.0
      %1387 = vmatprep.subr.mxu0 0.0
      %1388 = vmatpush1.msra.mxu0 0.0
      %1389 = vmatprep.subr.mxu0 0.0
      %1390 = vmatpush1.msra.mxu0 0.0
      %1391 = vmatprep.subr.mxu0 0.0
      %1392 = vmatpush1.msra.mxu0 0.0
      %1393 = vmatprep.mubr.f32.mxu0 0.0
      %1394 = vmatmul.mubr.f32.gmra.mrb[0].mxu0 %v1321
      %v1395 = vpop.f32.mrb[0].mxu0
      %v1396 = vadd.f32 0.0, %v1395
      %v1397 = vpop.f32.mrb[0].mxu0
      %v1398 = vadd.f32 0.0, %v1397
      %1399 = vdwg.mxu0
      %v1401 = vsel %vm412, %v1309, 0
      %v1404 = vsel %vm317, %v1307, 0
      %v1407 = vsel %vm317, %v1308, 0
      %1409 = vmatprep.subr.mxu0 %v1407
      %1410 = vmatpush1.msra.mxu0 %v1404
      %1411 = vmatprep.subr.mxu0 0.0
      %1412 = vmatpush1.msra.mxu0 0.0
      %1413 = vmatprep.subr.mxu0 0.0
      %1414 = vmatpush1.msra.mxu0 0.0
      %1415 = vmatprep.subr.mxu0 0.0
      %1416 = vmatpush1.msra.mxu0 0.0
      %1417 = vmatprep.subr.mxu0 0.0
      %1418 = vmatpush1.msra.mxu0 0.0
      %1419 = vmatprep.subr.mxu0 0.0
      %1420 = vmatpush1.msra.mxu0 0.0
      %1421 = vmatprep.subr.mxu0 0.0
      %1422 = vmatpush1.msra.mxu0 0.0
      %1423 = vmatprep.subr.mxu0 0.0
      %1424 = vmatpush1.msra.mxu0 0.0
      %1425 = vmatprep.subr.mxu0 0.0
      %1426 = vmatpush1.msra.mxu0 0.0
      %1427 = vmatprep.subr.mxu0 0.0
      %1428 = vmatpush1.msra.mxu0 0.0
      %1429 = vmatprep.subr.mxu0 0.0
      %1430 = vmatpush1.msra.mxu0 0.0
      %1431 = vmatprep.subr.mxu0 0.0
      %1432 = vmatpush1.msra.mxu0 0.0
      %1433 = vmatprep.subr.mxu0 0.0
      %1434 = vmatpush1.msra.mxu0 0.0
      %1435 = vmatprep.subr.mxu0 0.0
      %1436 = vmatpush1.msra.mxu0 0.0
      %1437 = vmatprep.subr.mxu0 0.0
      %1438 = vmatpush1.msra.mxu0 0.0
      %1439 = vmatprep.subr.mxu0 0.0
      %1440 = vmatpush1.msra.mxu0 0.0
      %1441 = vmatprep.subr.mxu0 0.0
      %1442 = vmatpush1.msra.mxu0 0.0
      %1443 = vmatprep.subr.mxu0 0.0
      %1444 = vmatpush1.msra.mxu0 0.0
      %1445 = vmatprep.subr.mxu0 0.0
      %1446 = vmatpush1.msra.mxu0 0.0
      %1447 = vmatprep.subr.mxu0 0.0
      %1448 = vmatpush1.msra.mxu0 0.0
      %1449 = vmatprep.subr.mxu0 0.0
      %1450 = vmatpush1.msra.mxu0 0.0
      %1451 = vmatprep.subr.mxu0 0.0
      %1452 = vmatpush1.msra.mxu0 0.0
      %1453 = vmatprep.subr.mxu0 0.0
      %1454 = vmatpush1.msra.mxu0 0.0
      %1455 = vmatprep.subr.mxu0 0.0
      %1456 = vmatpush1.msra.mxu0 0.0
      %1457 = vmatprep.subr.mxu0 0.0
      %1458 = vmatpush1.msra.mxu0 0.0
      %1459 = vmatprep.subr.mxu0 0.0
      %1460 = vmatpush1.msra.mxu0 0.0
      %1461 = vmatprep.subr.mxu0 0.0
      %1462 = vmatpush1.msra.mxu0 0.0
      %1463 = vmatprep.subr.mxu0 0.0
      %1464 = vmatpush1.msra.mxu0 0.0
      %1465 = vmatprep.subr.mxu0 0.0
      %1466 = vmatpush1.msra.mxu0 0.0
      %1467 = vmatprep.subr.mxu0 0.0
      %1468 = vmatpush1.msra.mxu0 0.0
      %1469 = vmatprep.subr.mxu0 0.0
      %1470 = vmatpush1.msra.mxu0 0.0
      %1471 = vmatprep.subr.mxu0 0.0
      %1472 = vmatpush1.msra.mxu0 0.0
      %1473 = vmatprep.mubr.f32.mxu0 0.0
      %1474 = vmatmul.mubr.f32.gmra.mrb[0].mxu0 %v1401
      %v1475 = vpop.f32.mrb[0].mxu0
      %v1476 = vadd.f32 %v1396, %v1475
      %v1477 = vpop.f32.mrb[0].mxu0
      %v1478 = vadd.f32 %v1398, %v1477
      %1479 = vdwg.mxu0
      %1480 = vrot.lane.b32.xlu0 %v1299, 15
      %v1481 = vpop.permute.xlu0 %1480
      %1482 = vrot.lane.b32.xlu0 %v1300, 15
      %v1483 = vpop.permute.xlu0 %1482
      %v1484 = vsel %vm577, %v1481, %v1483
      %v1485 = vsel %vm577, %v1483, %v1481
      %v1486 = vmul.f32 %v1485, %v583
      %v1487 = vmul.f32 %v1484, %v587
      %s1488 = scalar_lea.vmem %s7, 8
      %v1489 = vld [vmem:[%s1488] sm:$0xf]
      %v1491 = vsel %vm412, %v1489, 0
      %v1494 = vsel %vm317, %v1486, 0
      %v1497 = vsel %vm317, %v1487, 0
      %1499 = vmatprep.subr.mxu0 %v1497
      %1500 = vmatpush1.msra.mxu0 %v1494
      %1501 = vmatprep.subr.mxu0 0.0
      %1502 = vmatpush1.msra.mxu0 0.0
      %1503 = vmatprep.subr.mxu0 0.0
      %1504 = vmatpush1.msra.mxu0 0.0
      %1505 = vmatprep.subr.mxu0 0.0
      %1506 = vmatpush1.msra.mxu0 0.0
      %1507 = vmatprep.subr.mxu0 0.0
      %1508 = vmatpush1.msra.mxu0 0.0
      %1509 = vmatprep.subr.mxu0 0.0
      %1510 = vmatpush1.msra.mxu0 0.0
      %1511 = vmatprep.subr.mxu0 0.0
      %1512 = vmatpush1.msra.mxu0 0.0
      %1513 = vmatprep.subr.mxu0 0.0
      %1514 = vmatpush1.msra.mxu0 0.0
      %1515 = vmatprep.subr.mxu0 0.0
      %1516 = vmatpush1.msra.mxu0 0.0
      %1517 = vmatprep.subr.mxu0 0.0
      %1518 = vmatpush1.msra.mxu0 0.0
      %1519 = vmatprep.subr.mxu0 0.0
      %1520 = vmatpush1.msra.mxu0 0.0
      %1521 = vmatprep.subr.mxu0 0.0
      %1522 = vmatpush1.msra.mxu0 0.0
      %1523 = vmatprep.subr.mxu0 0.0
      %1524 = vmatpush1.msra.mxu0 0.0
      %1525 = vmatprep.subr.mxu0 0.0
      %1526 = vmatpush1.msra.mxu0 0.0
      %1527 = vmatprep.subr.mxu0 0.0
      %1528 = vmatpush1.msra.mxu0 0.0
      %1529 = vmatprep.subr.mxu0 0.0
      %1530 = vmatpush1.msra.mxu0 0.0
      %1531 = vmatprep.subr.mxu0 0.0
      %1532 = vmatpush1.msra.mxu0 0.0
      %1533 = vmatprep.subr.mxu0 0.0
      %1534 = vmatpush1.msra.mxu0 0.0
      %1535 = vmatprep.subr.mxu0 0.0
      %1536 = vmatpush1.msra.mxu0 0.0
      %1537 = vmatprep.subr.mxu0 0.0
      %1538 = vmatpush1.msra.mxu0 0.0
      %1539 = vmatprep.subr.mxu0 0.0
      %1540 = vmatpush1.msra.mxu0 0.0
      %1541 = vmatprep.subr.mxu0 0.0
      %1542 = vmatpush1.msra.mxu0 0.0
      %1543 = vmatprep.subr.mxu0 0.0
      %1544 = vmatpush1.msra.mxu0 0.0
      %1545 = vmatprep.subr.mxu0 0.0
      %1546 = vmatpush1.msra.mxu0 0.0
      %1547 = vmatprep.subr.mxu0 0.0
      %1548 = vmatpush1.msra.mxu0 0.0
      %1549 = vmatprep.subr.mxu0 0.0
      %1550 = vmatpush1.msra.mxu0 0.0
      %1551 = vmatprep.subr.mxu0 0.0
      %1552 = vmatpush1.msra.mxu0 0.0
      %1553 = vmatprep.subr.mxu0 0.0
      %1554 = vmatpush1.msra.mxu0 0.0
      %1555 = vmatprep.subr.mxu0 0.0
      %1556 = vmatpush1.msra.mxu0 0.0
      %1557 = vmatprep.subr.mxu0 0.0
      %1558 = vmatpush1.msra.mxu0 0.0
      %1559 = vmatprep.subr.mxu0 0.0
      %1560 = vmatpush1.msra.mxu0 0.0
      %1561 = vmatprep.subr.mxu0 0.0
      %1562 = vmatpush1.msra.mxu0 0.0
      %1563 = vmatprep.mubr.f32.mxu0 0.0
      %1564 = vmatmul.mubr.f32.gmra.mrb[0].mxu0 %v1491
      %v1565 = vpop.f32.mrb[0].mxu0
      %v1566 = vadd.f32 0.0, %v1565
      %v1567 = vpop.f32.mrb[0].mxu0
      %v1568 = vadd.f32 0.0, %v1567
      %1569 = vdwg.mxu0
      %v1570 = vadd.f32 %v1476, %v1566
      %v1571 = vadd.f32 %v1478, %v1568
      %1572 = vrot.lane.b32.xlu0 %v1299, 1
      %v1573 = vpop.permute.xlu0 %1572
      %1574 = vrot.lane.b32.xlu0 %v1300, 1
      %v1575 = vpop.permute.xlu0 %1574
      %v1576 = vsel %vm678, %v1573, %v1575
      %v1577 = vsel %vm678, %v1575, %v1573
      %v1578 = vmul.f32 %v1577, %v684
      %v1579 = vmul.f32 %v1576, %v688
      %s1580 = scalar_lea.vmem %s7, 12
      %v1581 = vld [vmem:[%s1580] sm:$0xf]
      %v1583 = vsel %vm412, %v1581, 0
      %v1586 = vsel %vm317, %v1578, 0
      %v1589 = vsel %vm317, %v1579, 0
      %1591 = vmatprep.subr.mxu0 %v1589
      %1592 = vmatpush1.msra.mxu0 %v1586
      %1593 = vmatprep.subr.mxu0 0.0
      %1594 = vmatpush1.msra.mxu0 0.0
      %1595 = vmatprep.subr.mxu0 0.0
      %1596 = vmatpush1.msra.mxu0 0.0
      %1597 = vmatprep.subr.mxu0 0.0
      %1598 = vmatpush1.msra.mxu0 0.0
      %1599 = vmatprep.subr.mxu0 0.0
      %1600 = vmatpush1.msra.mxu0 0.0
      %1601 = vmatprep.subr.mxu0 0.0
      %1602 = vmatpush1.msra.mxu0 0.0
      %1603 = vmatprep.subr.mxu0 0.0
      %1604 = vmatpush1.msra.mxu0 0.0
      %1605 = vmatprep.subr.mxu0 0.0
      %1606 = vmatpush1.msra.mxu0 0.0
      %1607 = vmatprep.subr.mxu0 0.0
      %1608 = vmatpush1.msra.mxu0 0.0
      %1609 = vmatprep.subr.mxu0 0.0
      %1610 = vmatpush1.msra.mxu0 0.0
      %1611 = vmatprep.subr.mxu0 0.0
      %1612 = vmatpush1.msra.mxu0 0.0
      %1613 = vmatprep.subr.mxu0 0.0
      %1614 = vmatpush1.msra.mxu0 0.0
      %1615 = vmatprep.subr.mxu0 0.0
      %1616 = vmatpush1.msra.mxu0 0.0
      %1617 = vmatprep.subr.mxu0 0.0
      %1618 = vmatpush1.msra.mxu0 0.0
      %1619 = vmatprep.subr.mxu0 0.0
      %1620 = vmatpush1.msra.mxu0 0.0
      %1621 = vmatprep.subr.mxu0 0.0
      %1622 = vmatpush1.msra.mxu0 0.0
      %1623 = vmatprep.subr.mxu0 0.0
      %1624 = vmatpush1.msra.mxu0 0.0
      %1625 = vmatprep.subr.mxu0 0.0
      %1626 = vmatpush1.msra.mxu0 0.0
      %1627 = vmatprep.subr.mxu0 0.0
      %1628 = vmatpush1.msra.mxu0 0.0
      %1629 = vmatprep.subr.mxu0 0.0
      %1630 = vmatpush1.msra.mxu0 0.0
      %1631 = vmatprep.subr.mxu0 0.0
      %1632 = vmatpush1.msra.mxu0 0.0
      %1633 = vmatprep.subr.mxu0 0.0
      %1634 = vmatpush1.msra.mxu0 0.0
      %1635 = vmatprep.subr.mxu0 0.0
      %1636 = vmatpush1.msra.mxu0 0.0
      %1637 = vmatprep.subr.mxu0 0.0
      %1638 = vmatpush1.msra.mxu0 0.0
      %1639 = vmatprep.subr.mxu0 0.0
      %1640 = vmatpush1.msra.mxu0 0.0
      %1641 = vmatprep.subr.mxu0 0.0
      %1642 = vmatpush1.msra.mxu0 0.0
      %1643 = vmatprep.subr.mxu0 0.0
      %1644 = vmatpush1.msra.mxu0 0.0
      %1645 = vmatprep.subr.mxu0 0.0
      %1646 = vmatpush1.msra.mxu0 0.0
      %1647 = vmatprep.subr.mxu0 0.0
      %1648 = vmatpush1.msra.mxu0 0.0
      %1649 = vmatprep.subr.mxu0 0.0
      %1650 = vmatpush1.msra.mxu0 0.0
      %1651 = vmatprep.subr.mxu0 0.0
      %1652 = vmatpush1.msra.mxu0 0.0
      %1653 = vmatprep.subr.mxu0 0.0
      %1654 = vmatpush1.msra.mxu0 0.0
      %1655 = vmatprep.mubr.f32.mxu0 0.0
      %1656 = vmatmul.mubr.f32.gmra.mrb[0].mxu0 %v1583
      %v1657 = vpop.f32.mrb[0].mxu0
      %v1658 = vadd.f32 0.0, %v1657
      %v1659 = vpop.f32.mrb[0].mxu0
      %v1660 = vadd.f32 0.0, %v1659
      %1661 = vdwg.mxu0
      %v1662 = vadd.f32 %v1570, %v1658
      %v1663 = vadd.f32 %v1571, %v1660
      %s1664 = scalar_lea.vmem %s7, 16
      %v1665 = vld [vmem:[%s1664] sm:$0xf]
      %v1667 = vsel %vm412, %v1665, 0
      %v1670 = vsel %vm317, %v1299, 0
      %v1673 = vsel %vm317, %v1300, 0
      %1675 = vmatprep.subr.mxu0 %v1673
      %1676 = vmatpush1.msra.mxu0 %v1670
      %1677 = vmatprep.subr.mxu0 0.0
      %1678 = vmatpush1.msra.mxu0 0.0
      %1679 = vmatprep.subr.mxu0 0.0
      %1680 = vmatpush1.msra.mxu0 0.0
      %1681 = vmatprep.subr.mxu0 0.0
      %1682 = vmatpush1.msra.mxu0 0.0
      %1683 = vmatprep.subr.mxu0 0.0
      %1684 = vmatpush1.msra.mxu0 0.0
      %1685 = vmatprep.subr.mxu0 0.0
      %1686 = vmatpush1.msra.mxu0 0.0
      %1687 = vmatprep.subr.mxu0 0.0
      %1688 = vmatpush1.msra.mxu0 0.0
      %1689 = vmatprep.subr.mxu0 0.0
      %1690 = vmatpush1.msra.mxu0 0.0
      %1691 = vmatprep.subr.mxu0 0.0
      %1692 = vmatpush1.msra.mxu0 0.0
      %1693 = vmatprep.subr.mxu0 0.0
      %1694 = vmatpush1.msra.mxu0 0.0
      %1695 = vmatprep.subr.mxu0 0.0
      %1696 = vmatpush1.msra.mxu0 0.0
      %1697 = vmatprep.subr.mxu0 0.0
      %1698 = vmatpush1.msra.mxu0 0.0
      %1699 = vmatprep.subr.mxu0 0.0
      %1700 = vmatpush1.msra.mxu0 0.0
      %1701 = vmatprep.subr.mxu0 0.0
      %1702 = vmatpush1.msra.mxu0 0.0
      %1703 = vmatprep.subr.mxu0 0.0
      %1704 = vmatpush1.msra.mxu0 0.0
      %1705 = vmatprep.subr.mxu0 0.0
      %1706 = vmatpush1.msra.mxu0 0.0
      %1707 = vmatprep.subr.mxu0 0.0
      %1708 = vmatpush1.msra.mxu0 0.0
      %1709 = vmatprep.subr.mxu0 0.0
      %1710 = vmatpush1.msra.mxu0 0.0
      %1711 = vmatprep.subr.mxu0 0.0
      %1712 = vmatpush1.msra.mxu0 0.0
      %1713 = vmatprep.subr.mxu0 0.0
      %1714 = vmatpush1.msra.mxu0 0.0
      %1715 = vmatprep.subr.mxu0 0.0
      %1716 = vmatpush1.msra.mxu0 0.0
      %1717 = vmatprep.subr.mxu0 0.0
      %1718 = vmatpush1.msra.mxu0 0.0
      %1719 = vmatprep.subr.mxu0 0.0
      %1720 = vmatpush1.msra.mxu0 0.0
      %1721 = vmatprep.subr.mxu0 0.0
      %1722 = vmatpush1.msra.mxu0 0.0
      %1723 = vmatprep.subr.mxu0 0.0
      %1724 = vmatpush1.msra.mxu0 0.0
      %1725 = vmatprep.subr.mxu0 0.0
      %1726 = vmatpush1.msra.mxu0 0.0
      %1727 = vmatprep.subr.mxu0 0.0
      %1728 = vmatpush1.msra.mxu0 0.0
      %1729 = vmatprep.subr.mxu0 0.0
      %1730 = vmatpush1.msra.mxu0 0.0
      %1731 = vmatprep.subr.mxu0 0.0
      %1732 = vmatpush1.msra.mxu0 0.0
      %1733 = vmatprep.subr.mxu0 0.0
      %1734 = vmatpush1.msra.mxu0 0.0
      %1735 = vmatprep.subr.mxu0 0.0
      %1736 = vmatpush1.msra.mxu0 0.0
      %1737 = vmatprep.subr.mxu0 0.0
      %1738 = vmatpush1.msra.mxu0 0.0
      %1739 = vmatprep.mubr.f32.mxu0 0.0
      %1740 = vmatmul.mubr.f32.gmra.mrb[0].mxu0 %v1667
      %v1741 = vpop.f32.mrb[0].mxu0
      %v1742 = vadd.f32 0.0, %v1741
      %v1743 = vpop.f32.mrb[0].mxu0
      %v1744 = vadd.f32 0.0, %v1743
      %1745 = vdwg.mxu0
      %v1746 = vadd.f32 %v1662, %v1742
      %v1747 = vadd.f32 %v1663, %v1744
      %1748 = vrot.lane.b32.xlu0 %v1299, 127
      %v1749 = vpop.permute.xlu0 %1748
      %1750 = vrot.lane.b32.xlu0 %v1300, 127
      %v1751 = vpop.permute.xlu0 %1750
      %v1752 = vsel %vm861, %v1749, %v1751
      %v1753 = vsel %vm861, %v1751, %v1749
      %v1754 = vmul.f32 %v1752, %v867
      %v1755 = vmul.f32 %v1753, %v871
      %s1756 = scalar_lea.vmem %s7, 20
      %v1757 = vld [vmem:[%s1756] sm:$0xf]
      %v1759 = vsel %vm412, %v1757, 0
      %v1762 = vsel %vm317, %v1754, 0
      %v1765 = vsel %vm317, %v1755, 0
      %1767 = vmatprep.subr.mxu0 %v1765
      %1768 = vmatpush1.msra.mxu0 %v1762
      %1769 = vmatprep.subr.mxu0 0.0
      %1770 = vmatpush1.msra.mxu0 0.0
      %1771 = vmatprep.subr.mxu0 0.0
      %1772 = vmatpush1.msra.mxu0 0.0
      %1773 = vmatprep.subr.mxu0 0.0
      %1774 = vmatpush1.msra.mxu0 0.0
      %1775 = vmatprep.subr.mxu0 0.0
      %1776 = vmatpush1.msra.mxu0 0.0
      %1777 = vmatprep.subr.mxu0 0.0
      %1778 = vmatpush1.msra.mxu0 0.0
      %1779 = vmatprep.subr.mxu0 0.0
      %1780 = vmatpush1.msra.mxu0 0.0
      %1781 = vmatprep.subr.mxu0 0.0
      %1782 = vmatpush1.msra.mxu0 0.0
      %1783 = vmatprep.subr.mxu0 0.0
      %1784 = vmatpush1.msra.mxu0 0.0
      %1785 = vmatprep.subr.mxu0 0.0
      %1786 = vmatpush1.msra.mxu0 0.0
      %1787 = vmatprep.subr.mxu0 0.0
      %1788 = vmatpush1.msra.mxu0 0.0
      %1789 = vmatprep.subr.mxu0 0.0
      %1790 = vmatpush1.msra.mxu0 0.0
      %1791 = vmatprep.subr.mxu0 0.0
      %1792 = vmatpush1.msra.mxu0 0.0
      %1793 = vmatprep.subr.mxu0 0.0
      %1794 = vmatpush1.msra.mxu0 0.0
      %1795 = vmatprep.subr.mxu0 0.0
      %1796 = vmatpush1.msra.mxu0 0.0
      %1797 = vmatprep.subr.mxu0 0.0
      %1798 = vmatpush1.msra.mxu0 0.0
      %1799 = vmatprep.subr.mxu0 0.0
      %1800 = vmatpush1.msra.mxu0 0.0
      %1801 = vmatprep.subr.mxu0 0.0
      %1802 = vmatpush1.msra.mxu0 0.0
      %1803 = vmatprep.subr.mxu0 0.0
      %1804 = vmatpush1.msra.mxu0 0.0
      %1805 = vmatprep.subr.mxu0 0.0
      %1806 = vmatpush1.msra.mxu0 0.0
      %1807 = vmatprep.subr.mxu0 0.0
      %1808 = vmatpush1.msra.mxu0 0.0
      %1809 = vmatprep.subr.mxu0 0.0
      %1810 = vmatpush1.msra.mxu0 0.0
      %1811 = vmatprep.subr.mxu0 0.0
      %1812 = vmatpush1.msra.mxu0 0.0
      %1813 = vmatprep.subr.mxu0 0.0
      %1814 = vmatpush1.msra.mxu0 0.0
      %1815 = vmatprep.subr.mxu0 0.0
      %1816 = vmatpush1.msra.mxu0 0.0
      %1817 = vmatprep.subr.mxu0 0.0
      %1818 = vmatpush1.msra.mxu0 0.0
      %1819 = vmatprep.subr.mxu0 0.0
      %1820 = vmatpush1.msra.mxu0 0.0
      %1821 = vmatprep.subr.mxu0 0.0
      %1822 = vmatpush1.msra.mxu0 0.0
      %1823 = vmatprep.subr.mxu0 0.0
      %1824 = vmatpush1.msra.mxu0 0.0
      %1825 = vmatprep.subr.mxu0 0.0
      %1826 = vmatpush1.msra.mxu0 0.0
      %1827 = vmatprep.subr.mxu0 0.0
      %1828 = vmatpush1.msra.mxu0 0.0
      %1829 = vmatprep.subr.mxu0 0.0
      %1830 = vmatpush1.msra.mxu0 0.0
      %1831 = vmatprep.mubr.f32.mxu0 0.0
      %1832 = vmatmul.mubr.f32.gmra.mrb[0].mxu0 %v1759
      %v1833 = vpop.f32.mrb[0].mxu0
      %v1834 = vadd.f32 0.0, %v1833
      %v1835 = vpop.f32.mrb[0].mxu0
      %v1836 = vadd.f32 0.0, %v1835
      %1837 = vdwg.mxu0
      %v1838 = vadd.f32 %v1746, %v1834
      %v1839 = vadd.f32 %v1747, %v1836
      %1840 = vrot.lane.b32.xlu0 %v1299, 113
      %v1841 = vpop.permute.xlu0 %1840
      %1842 = vrot.lane.b32.xlu0 %v1300, 113
      %v1843 = vpop.permute.xlu0 %1842
      %v1844 = vsel %vm962, %v1841, %v1843
      %v1845 = vsel %vm962, %v1843, %v1841
      %v1846 = vmul.f32 %v1844, %v968
      %v1847 = vmul.f32 %v1845, %v972
      %s1848 = scalar_lea.vmem %s7, 24
      %v1849 = vld [vmem:[%s1848] sm:$0xf]
      %v1851 = vsel %vm412, %v1849, 0
      %v1854 = vsel %vm317, %v1846, 0
      %v1857 = vsel %vm317, %v1847, 0
      %1859 = vmatprep.subr.mxu0 %v1857
      %1860 = vmatpush1.msra.mxu0 %v1854
      %1861 = vmatprep.subr.mxu0 0.0
      %1862 = vmatpush1.msra.mxu0 0.0
      %1863 = vmatprep.subr.mxu0 0.0
      %1864 = vmatpush1.msra.mxu0 0.0
      %1865 = vmatprep.subr.mxu0 0.0
      %1866 = vmatpush1.msra.mxu0 0.0
      %1867 = vmatprep.subr.mxu0 0.0
      %1868 = vmatpush1.msra.mxu0 0.0
      %1869 = vmatprep.subr.mxu0 0.0
      %1870 = vmatpush1.msra.mxu0 0.0
      %1871 = vmatprep.subr.mxu0 0.0
      %1872 = vmatpush1.msra.mxu0 0.0
      %1873 = vmatprep.subr.mxu0 0.0
      %1874 = vmatpush1.msra.mxu0 0.0
      %1875 = vmatprep.subr.mxu0 0.0
      %1876 = vmatpush1.msra.mxu0 0.0
      %1877 = vmatprep.subr.mxu0 0.0
      %1878 = vmatpush1.msra.mxu0 0.0
      %1879 = vmatprep.subr.mxu0 0.0
      %1880 = vmatpush1.msra.mxu0 0.0
      %1881 = vmatprep.subr.mxu0 0.0
      %1882 = vmatpush1.msra.mxu0 0.0
      %1883 = vmatprep.subr.mxu0 0.0
      %1884 = vmatpush1.msra.mxu0 0.0
      %1885 = vmatprep.subr.mxu0 0.0
      %1886 = vmatpush1.msra.mxu0 0.0
      %1887 = vmatprep.subr.mxu0 0.0
      %1888 = vmatpush1.msra.mxu0 0.0
      %1889 = vmatprep.subr.mxu0 0.0
      %1890 = vmatpush1.msra.mxu0 0.0
      %1891 = vmatprep.subr.mxu0 0.0
      %1892 = vmatpush1.msra.mxu0 0.0
      %1893 = vmatprep.subr.mxu0 0.0
      %1894 = vmatpush1.msra.mxu0 0.0
      %1895 = vmatprep.subr.mxu0 0.0
      %1896 = vmatpush1.msra.mxu0 0.0
      %1897 = vmatprep.subr.mxu0 0.0
      %1898 = vmatpush1.msra.mxu0 0.0
      %1899 = vmatprep.subr.mxu0 0.0
      %1900 = vmatpush1.msra.mxu0 0.0
      %1901 = vmatprep.subr.mxu0 0.0
      %1902 = vmatpush1.msra.mxu0 0.0
      %1903 = vmatprep.subr.mxu0 0.0
      %1904 = vmatpush1.msra.mxu0 0.0
      %1905 = vmatprep.subr.mxu0 0.0
      %1906 = vmatpush1.msra.mxu0 0.0
      %1907 = vmatprep.subr.mxu0 0.0
      %1908 = vmatpush1.msra.mxu0 0.0
      %1909 = vmatprep.subr.mxu0 0.0
      %1910 = vmatpush1.msra.mxu0 0.0
      %1911 = vmatprep.subr.mxu0 0.0
      %1912 = vmatpush1.msra.mxu0 0.0
      %1913 = vmatprep.subr.mxu0 0.0
      %1914 = vmatpush1.msra.mxu0 0.0
      %1915 = vmatprep.subr.mxu0 0.0
      %1916 = vmatpush1.msra.mxu0 0.0
      %1917 = vmatprep.subr.mxu0 0.0
      %1918 = vmatpush1.msra.mxu0 0.0
      %1919 = vmatprep.subr.mxu0 0.0
      %1920 = vmatpush1.msra.mxu0 0.0
      %1921 = vmatprep.subr.mxu0 0.0
      %1922 = vmatpush1.msra.mxu0 0.0
      %1923 = vmatprep.mubr.f32.mxu0 0.0
      %1924 = vmatmul.mubr.f32.gmra.mrb[0].mxu0 %v1851
      %v1925 = vpop.f32.mrb[0].mxu0
      %v1926 = vadd.f32 0.0, %v1925
      %v1927 = vpop.f32.mrb[0].mxu0
      %v1928 = vadd.f32 0.0, %v1927
      %1929 = vdwg.mxu0
      %v1930 = vadd.f32 %v1838, %v1926
      %v1931 = vadd.f32 %v1839, %v1928
      %1932 = vrot.lane.b32.xlu0 %v1299, 112
      %v1933 = vpop.permute.xlu0 %1932
      %1934 = vrot.lane.b32.xlu0 %v1300, 112
      %v1935 = vpop.permute.xlu0 %1934
      %v1936 = vsel %vm1063, %v1933, %v1935
      %v1937 = vsel %vm1063, %v1935, %v1933
      %v1938 = vmul.f32 %v1936, %v1069
      %v1939 = vmul.f32 %v1937, %v1073
      %s1940 = scalar_lea.vmem %s7, 28
      %v1941 = vld [vmem:[%s1940] sm:$0xf]
      %v1943 = vsel %vm412, %v1941, 0
      %v1946 = vsel %vm317, %v1938, 0
      %v1949 = vsel %vm317, %v1939, 0
      %1951 = vmatprep.subr.mxu0 %v1949
      %1952 = vmatpush1.msra.mxu0 %v1946
      %1953 = vmatprep.subr.mxu0 0.0
      %1954 = vmatpush1.msra.mxu0 0.0
      %1955 = vmatprep.subr.mxu0 0.0
      %1956 = vmatpush1.msra.mxu0 0.0
      %1957 = vmatprep.subr.mxu0 0.0
      %1958 = vmatpush1.msra.mxu0 0.0
      %1959 = vmatprep.subr.mxu0 0.0
      %1960 = vmatpush1.msra.mxu0 0.0
      %1961 = vmatprep.subr.mxu0 0.0
      %1962 = vmatpush1.msra.mxu0 0.0
      %1963 = vmatprep.subr.mxu0 0.0
      %1964 = vmatpush1.msra.mxu0 0.0
      %1965 = vmatprep.subr.mxu0 0.0
      %1966 = vmatpush1.msra.mxu0 0.0
      %1967 = vmatprep.subr.mxu0 0.0
      %1968 = vmatpush1.msra.mxu0 0.0
      %1969 = vmatprep.subr.mxu0 0.0
      %1970 = vmatpush1.msra.mxu0 0.0
      %1971 = vmatprep.subr.mxu0 0.0
      %1972 = vmatpush1.msra.mxu0 0.0
      %1973 = vmatprep.subr.mxu0 0.0
      %1974 = vmatpush1.msra.mxu0 0.0
      %1975 = vmatprep.subr.mxu0 0.0
      %1976 = vmatpush1.msra.mxu0 0.0
      %1977 = vmatprep.subr.mxu0 0.0
      %1978 = vmatpush1.msra.mxu0 0.0
      %1979 = vmatprep.subr.mxu0 0.0
      %1980 = vmatpush1.msra.mxu0 0.0
      %1981 = vmatprep.subr.mxu0 0.0
      %1982 = vmatpush1.msra.mxu0 0.0
      %1983 = vmatprep.subr.mxu0 0.0
      %1984 = vmatpush1.msra.mxu0 0.0
      %1985 = vmatprep.subr.mxu0 0.0
      %1986 = vmatpush1.msra.mxu0 0.0
      %1987 = vmatprep.subr.mxu0 0.0
      %1988 = vmatpush1.msra.mxu0 0.0
      %1989 = vmatprep.subr.mxu0 0.0
      %1990 = vmatpush1.msra.mxu0 0.0
      %1991 = vmatprep.subr.mxu0 0.0
      %1992 = vmatpush1.msra.mxu0 0.0
      %1993 = vmatprep.subr.mxu0 0.0
      %1994 = vmatpush1.msra.mxu0 0.0
      %1995 = vmatprep.subr.mxu0 0.0
      %1996 = vmatpush1.msra.mxu0 0.0
      %1997 = vmatprep.subr.mxu0 0.0
      %1998 = vmatpush1.msra.mxu0 0.0
      %1999 = vmatprep.subr.mxu0 0.0
      %2000 = vmatpush1.msra.mxu0 0.0
      %2001 = vmatprep.subr.mxu0 0.0
      %2002 = vmatpush1.msra.mxu0 0.0
      %2003 = vmatprep.subr.mxu0 0.0
      %2004 = vmatpush1.msra.mxu0 0.0
      %2005 = vmatprep.subr.mxu0 0.0
      %2006 = vmatpush1.msra.mxu0 0.0
      %2007 = vmatprep.subr.mxu0 0.0
      %2008 = vmatpush1.msra.mxu0 0.0
      %2009 = vmatprep.subr.mxu0 0.0
      %2010 = vmatpush1.msra.mxu0 0.0
      %2011 = vmatprep.subr.mxu0 0.0
      %2012 = vmatpush1.msra.mxu0 0.0
      %2013 = vmatprep.subr.mxu0 0.0
      %2014 = vmatpush1.msra.mxu0 0.0
      %2015 = vmatprep.mubr.f32.mxu0 0.0
      %2016 = vmatmul.mubr.f32.gmra.mrb[0].mxu0 %v1943
      %v2017 = vpop.f32.mrb[0].mxu0
      %v2018 = vadd.f32 0.0, %v2017
      %v2019 = vpop.f32.mrb[0].mxu0
      %v2020 = vadd.f32 0.0, %v2019
      %2021 = vdwg.mxu0
      %v2022 = vadd.f32 %v1930, %v2018
      %v2023 = vadd.f32 %v1931, %v2020
      %2024 = vrot.lane.b32.xlu0 %v1299, 111
      %v2025 = vpop.permute.xlu0 %2024
      %2026 = vrot.lane.b32.xlu0 %v1300, 111
      %v2027 = vpop.permute.xlu0 %2026
      %v2028 = vsel %vm1164, %v2025, %v2027
      %v2029 = vsel %vm1164, %v2027, %v2025
      %v2030 = vmul.f32 %v2028, %v1170
      %v2031 = vmul.f32 %v2029, %v1174
      %s2032 = scalar_lea.vmem %s7, 32
      %v2033 = vld [vmem:[%s2032] sm:$0xf]
      %v2035 = vsel %vm412, %v2033, 0
      %v2038 = vsel %vm317, %v2030, 0
      %v2041 = vsel %vm317, %v2031, 0
      %2043 = vmatprep.subr.mxu0 %v2041
      %2044 = vmatpush1.msra.mxu0 %v2038
      %2045 = vmatprep.subr.mxu0 0.0
      %2046 = vmatpush1.msra.mxu0 0.0
      %2047 = vmatprep.subr.mxu0 0.0
      %2048 = vmatpush1.msra.mxu0 0.0
      %2049 = vmatprep.subr.mxu0 0.0
      %2050 = vmatpush1.msra.mxu0 0.0
      %2051 = vmatprep.subr.mxu0 0.0
      %2052 = vmatpush1.msra.mxu0 0.0
      %2053 = vmatprep.subr.mxu0 0.0
      %2054 = vmatpush1.msra.mxu0 0.0
      %2055 = vmatprep.subr.mxu0 0.0
      %2056 = vmatpush1.msra.mxu0 0.0
      %2057 = vmatprep.subr.mxu0 0.0
      %2058 = vmatpush1.msra.mxu0 0.0
      %2059 = vmatprep.subr.mxu0 0.0
      %2060 = vmatpush1.msra.mxu0 0.0
      %2061 = vmatprep.subr.mxu0 0.0
      %2062 = vmatpush1.msra.mxu0 0.0
      %2063 = vmatprep.subr.mxu0 0.0
      %2064 = vmatpush1.msra.mxu0 0.0
      %2065 = vmatprep.subr.mxu0 0.0
      %2066 = vmatpush1.msra.mxu0 0.0
      %2067 = vmatprep.subr.mxu0 0.0
      %2068 = vmatpush1.msra.mxu0 0.0
      %2069 = vmatprep.subr.mxu0 0.0
      %2070 = vmatpush1.msra.mxu0 0.0
      %2071 = vmatprep.subr.mxu0 0.0
      %2072 = vmatpush1.msra.mxu0 0.0
      %2073 = vmatprep.subr.mxu0 0.0
      %2074 = vmatpush1.msra.mxu0 0.0
      %2075 = vmatprep.subr.mxu0 0.0
      %2076 = vmatpush1.msra.mxu0 0.0
      %2077 = vmatprep.subr.mxu0 0.0
      %2078 = vmatpush1.msra.mxu0 0.0
      %2079 = vmatprep.subr.mxu0 0.0
      %2080 = vmatpush1.msra.mxu0 0.0
      %2081 = vmatprep.subr.mxu0 0.0
      %2082 = vmatpush1.msra.mxu0 0.0
      %2083 = vmatprep.subr.mxu0 0.0
      %2084 = vmatpush1.msra.mxu0 0.0
      %2085 = vmatprep.subr.mxu0 0.0
      %2086 = vmatpush1.msra.mxu0 0.0
      %2087 = vmatprep.subr.mxu0 0.0
      %2088 = vmatpush1.msra.mxu0 0.0
      %2089 = vmatprep.subr.mxu0 0.0
      %2090 = vmatpush1.msra.mxu0 0.0
      %2091 = vmatprep.subr.mxu0 0.0
      %2092 = vmatpush1.msra.mxu0 0.0
      %2093 = vmatprep.subr.mxu0 0.0
      %2094 = vmatpush1.msra.mxu0 0.0
      %2095 = vmatprep.subr.mxu0 0.0
      %2096 = vmatpush1.msra.mxu0 0.0
      %2097 = vmatprep.subr.mxu0 0.0
      %2098 = vmatpush1.msra.mxu0 0.0
      %2099 = vmatprep.subr.mxu0 0.0
      %2100 = vmatpush1.msra.mxu0 0.0
      %2101 = vmatprep.subr.mxu0 0.0
      %2102 = vmatpush1.msra.mxu0 0.0
      %2103 = vmatprep.subr.mxu0 0.0
      %2104 = vmatpush1.msra.mxu0 0.0
      %2105 = vmatprep.subr.mxu0 0.0
      %2106 = vmatpush1.msra.mxu0 0.0
      %2107 = vmatprep.mubr.f32.mxu0 0.0
      %2108 = vmatmul.mubr.f32.gmra.mrb[0].mxu0 %v2035
      %v2109 = vpop.f32.mrb[0].mxu0
      %v2110 = vadd.f32 0.0, %v2109
      %v2111 = vpop.f32.mrb[0].mxu0
      %v2112 = vadd.f32 0.0, %v2111
      %2113 = vdwg.mxu0
      %v2114 = vadd.f32 %v2022, %v2110
      %v2115 = vadd.f32 %v2023, %v2112
      %v2116 = vadd.f32 %v2114, %v311
      %v2117 = vadd.f32 %v2115, %v315
      %v2120 = vcombine.low %v2116, %v2117
      %2122 = vst [vmem:[%s307] sm:$0xff] %v2120
      %s2123 = smul.u32 2, %s19
      %p2124 = scmp.lt.s32.totalorder %s2123, 3
      %s2125 = scalar_select %p2124, %s2123, 3
      %s2126 = smul.addr %s2125, 4
      %s2127 = scalar_lea.vmem %s8, %s2126
      // Predicated region
      $region53: #{resblock_forward.1} parent=51 // pred_check
        %p2128 = pneg %p210
      $region54: #{resblock_forward.1} parent=51 // pred_check_branch
        %2130 = sbr.rel (%p2128) target = $region56
      $region55: #{resblock_forward.1} parent=51 // pred_region
        %s2131 = smul.u32 2, %s19
      $region56: #{resblock_forward.1} parent=51 // pred_fallthru
        _
    $region52: #{resblock_forward.1} parent=5 // pred_fallthru
      _
    %p2132 = scmp.le.s32.totalorder 2, %s14
    // Predicated region
    $region57: #{resblock_forward.1} parent=5 // pred_check
      %p2133 = pneg %p2132
    $region58: #{resblock_forward.1} parent=5 // pred_check_branch
      %2135 = sbr.rel (%p2133) target = $region60
    $region59: #{resblock_forward.1} parent=5 // pred_region
      %s2136 = ssub.s32 %s14, 2
      // Predicated region
      $region61: #{resblock_forward.1} parent=59 // pred_check
        %p2137 = pneg %p216
      $region62: #{resblock_forward.1} parent=59 // pred_check_branch
        %2139 = sbr.rel (%p2137) target = $region64
      $region63: #{resblock_forward.1} parent=59 // pred_region
        %s2140 = smul.u32 2, %s20
        %p2141 = scmp.lt.s32.totalorder %s2140, 3
        %s2142 = scalar_select %p2141, %s2140, 3
        %s2143 = smul.addr %s2142, 4
        %s2144 = scalar_lea.vmem %s8, %s2143
      $region64: #{resblock_forward.1} parent=59 // pred_fallthru
        _
    $region60: #{resblock_forward.1} parent=5 // pred_fallthru
      _
  $region6: #{resblock_forward.1} parent=0 // loop_footer
    %s18 = sadd.s32 1, %s14
  $region7: #{resblock_forward.1} parent=0 // loop_footer_branch
    %13 = sbr.rel target = $region3
  $region8: #{resblock_forward.1} parent=0 // loop_exit
    _

</llo_original>
